<compile_context>
chip_gen: v7x
topology: tpu7x:2x2x1
jax: 0.10.0
libtpu: 0.0.40
codegen_flags: <defaults>
</compile_context>

<pallas_src>
import math
from functools import partial

import jax
import jax.numpy as jnp
from jax import lax
from jax.experimental import pallas as pl
from jax.experimental.pallas import tpu as pltpu


def _tpu_generation():
    """Best-effort TPU generation (5, 6, 7, ...) from the device kind string."""
    try:
        kind = jax.devices()[0].device_kind.lower()
    except Exception:
        return 6
    for g in (7, 6, 5, 4):
        if f"v{g}" in kind:
            return g
    return 6


def _pick_tile(n, target, multiple):
    """Largest t <= target with n % t == 0 and t % multiple == 0, else the
    full axis (block_shape == full dim is always legal)."""
    if n <= target:
        return n
    t = (min(target, n) // multiple) * multiple
    while t >= multiple:
        if n % t == 0:
            return t
        t -= multiple
    return n


def _vmem_limit_bytes(gen, tq, tk, H, E, D, in_bytes, mxu_bytes):
    """Scoped VMEM request derived from the actual live set, not a blanket cap."""
    live = 0
    live += 2 * tq * H * E * in_bytes     # Q tile (double-buffered)
    live += 2 * tk * H * E * in_bytes     # K tile
    live += 2 * tk * H * D * in_bytes     # V tile
    live += 2 * tq * H * D * in_bytes     # O tile
    live += 2 * H * tq * 128 * 4          # m + l scratch (f32, lane-dense)
    live += H * tq * D * 4                # acc scratch (f32)
    live += tq * H * E * mxu_bytes        # pre-scaled Q scratch
    live += 2 * tq * tk * 4               # s / p temporaries (rough)
    limit = int(live * 1.5) + (4 << 20)   # headroom for Mosaic internal scratch
    cap = (56 << 20) if gen >= 7 else (100 << 20)   # 64 MiB phys on v7x, 128 otherwise
    return int(max(min(limit, cap), 16 << 20))


def _flash_attn_kernel(q_ref, k_ref, v_ref, o_ref,
                       m_scratch, l_scratch, acc_scratch, qs_scratch,
                       *, scale, num_heads, e_dim, d_dim,
                       compute_dtype, exp_dtype):
    """One (batch, q-tile, kv-tile) grid step, all heads.

    q_ref:       (1, tq, H*E)   query tile (heads merged into lanes)
    k_ref:       (1, tk, H*E)   key tile
    v_ref:       (1, tk, H*D)   value tile
    o_ref:       (1, tq, H*D)   output tile (written on the last kv step)
    m_scratch:   (H, tq, 128)   running row max, lane-replicated (f32)
    l_scratch:   (H, tq, 128)   running softmax denom, lane-replicated (f32)
    acc_scratch: (H, tq, D)     un-normalized output accumulator (f32)
    qs_scratch:  (tq, H*E)      scale * Q in the MXU compute dtype
    """
    kv_idx = pl.program_id(2)

    @pl.when(kv_idx == 0)
    def _init():
        m_scratch[...] = jnp.full_like(m_scratch, -jnp.inf)
        l_scratch[...] = jnp.zeros_like(l_scratch)
        acc_scratch[...] = jnp.zeros_like(acc_scratch)
        # Fold the softmax scale into Q once per q-tile (not per head/kv-step).
        # The multiply is done in f32 for better rounding, stored in the MXU dtype.
        qs_scratch[...] = (q_ref[0].astype(jnp.float32) * scale
                           ).astype(qs_scratch.dtype)

    for h in range(num_heads):  # static unroll over heads (H is small)
        q_h = qs_scratch[:, h * e_dim:(h + 1) * e_dim]      # (tq, E), pre-scaled
        k_h = k_ref[0, :, h * e_dim:(h + 1) * e_dim]        # (tk, E)
        v_h = v_ref[0, :, h * d_dim:(h + 1) * d_dim]        # (tk, D)
        if k_h.dtype != compute_dtype:
            k_h = k_h.astype(compute_dtype)
        if v_h.dtype != compute_dtype:
            v_h = v_h.astype(compute_dtype)

        # scores (tq, tk): NT matmul with f32 accumulation on the MXU.
        s = lax.dot_general(q_h, k_h, (((1,), (1,)), ((), ())),
                            preferred_element_type=jnp.float32)

        # Online softmax update for this head (stats lane-replicated in VMEM).
        m_prev = m_scratch[h]                                # (tq, 128)
        l_prev = l_scratch[h]                                # (tq, 128)
        row_max = jnp.max(s, axis=-1, keepdims=True)         # (tq, 1)
        m_next = jnp.maximum(m_prev, row_max)                # (tq, 128) replicated
        m_next1 = m_next[:, :1]                              # (tq, 1)

        alpha = jnp.exp(m_prev[:, :1] - m_next1)             # (tq, 1), f32
        # bf16 exp on v6e/v7x halves EUP pressure; f32 elsewhere (v5e).
        p = jnp.exp((s - m_next1).astype(exp_dtype))         # (tq, tk)
        row_sum = jnp.sum(p, axis=-1, keepdims=True, dtype=jnp.float32)

        l_scratch[h] = alpha * l_prev + row_sum              # unmasked lane-dense store
        pv = p if p.dtype == v_h.dtype else p.astype(v_h.dtype)
        acc_scratch[h] = alpha * acc_scratch[h] + jnp.dot(
            pv, v_h, preferred_element_type=jnp.float32)
        m_scratch[h] = m_next                                # unmasked lane-dense store

    @pl.when(kv_idx == pl.num_programs(2) - 1)
    def _finalize():
        for h in range(num_heads):
            inv_l = pl.reciprocal(l_scratch[h][:, :1], approx=True)  # EUP slot
            o_ref[0, :, h * d_dim:(h + 1) * d_dim] = (
                acc_scratch[h] * inv_l).astype(o_ref.dtype)


def full_attention(queries, keys, values, scale=None, *,
                   q_tile=None, kv_tile=None, use_bf16_mxu=None,
                   vmem_limit_bytes=None):
    """queries (B,L,H,E), keys (B,S,H,E), values (B,S,H,D) -> (B,L,H,D)."""
    B, L, H, E = queries.shape
    Bv, S, Hv, D = values.shape
    assert keys.shape == (B, S, H, E)
    assert (Bv, Hv) == (B, H)
    scale = (1.0 / math.sqrt(E)) if scale is None else float(scale)

    gen = _tpu_generation()
    in_dtype = queries.dtype
    in_bytes = jnp.dtype(in_dtype).itemsize

    # MXU compute dtype: the input dtype for bf16 inputs; for f32 inputs,
    # casting matmul operands to bf16 is opt-in (recovers ~3-4x MXU throughput
    # on all generations; accumulation stays f32 either way).
    if use_bf16_mxu is None:
        use_bf16_mxu = (jnp.dtype(in_dtype) == jnp.dtype(jnp.bfloat16))
    compute_dtype = jnp.bfloat16 if use_bf16_mxu else in_dtype
    # bf16 exp only where the EUP supports it (v6e/v7x); keep elementwise math
    # f32 on v5e (no bf16 VPU/EUP there).
    use_bf16_exp = (gen >= 6) and (jnp.dtype(compute_dtype) == jnp.dtype(jnp.bfloat16))
    exp_dtype = jnp.bfloat16 if use_bf16_exp else jnp.float32

    # Tile targets: big kv tiles amortize per-step overhead / acc rescales;
    # bigger q tiles cut K/V HBM re-reads (dominant lever on v5e).
    if kv_tile is None:
        kv_tile = 512
    if q_tile is None:
        q_tile = 512 if gen <= 5 else 256

    sub = {2: 16, 1: 32}.get(in_bytes, 8)          # dtype-aware sublane multiple
    tq = _pick_tile(L, q_tile, sub)
    tk = _pick_tile(S, kv_tile, 128)               # tk is the lane dim of s/p
    if tk == S and S > kv_tile:                    # no 128-multiple divisor: fall back
        tk = _pick_tile(S, kv_tile, sub)

    # v7x has 2 TensorCores: keep the parallel grid extent >= 2 so both get work.
    if gen >= 7 and B * (L // tq) < 2 and L >= 2 * sub:
        half = max(sub, (L // 2) // sub * sub)
        tq2 = _pick_tile(L, half, sub)
        if tq2 < L and L // tq2 >= 2:
            tq = tq2

    # Fold heads into the minor (lane) dim: free reshapes, no HBM transpose.
    # NOTE: for best performance E and D should be multiples of 128 (128-lane-
    # aligned head slices); smaller head dims run correctly but pay relayout.
    q = queries.reshape(B, L, H * E)
    k = keys.reshape(B, S, H * E)
    v = values.reshape(B, S, H * D)

    grid = (B, L // tq, S // tk)   # kv (reduction) axis last, "arbitrary"

    if vmem_limit_bytes is None:
        vmem_limit_bytes = _vmem_limit_bytes(
            gen, tq, tk, H, E, D, in_bytes, jnp.dtype(compute_dtype).itemsize)

    kernel = partial(_flash_attn_kernel, scale=scale, num_heads=H,
                     e_dim=E, d_dim=D, compute_dtype=jnp.dtype(compute_dtype),
                     exp_dtype=exp_dtype)

    out = pl.pallas_call(
        kernel,
        out_shape=jax.ShapeDtypeStruct((B, L, H * D), queries.dtype),
        grid_spec=pltpu.PrefetchScalarGridSpec(
            num_scalar_prefetch=0,
            grid=grid,
            in_specs=[
                pl.BlockSpec((1, tq, H * E), lambda b, qi, ki: (b, qi, 0)),
                pl.BlockSpec((1, tk, H * E), lambda b, qi, ki: (b, ki, 0)),
                pl.BlockSpec((1, tk, H * D), lambda b, qi, ki: (b, ki, 0)),
            ],
            out_specs=pl.BlockSpec((1, tq, H * D), lambda b, qi, ki: (b, qi, 0)),
            scratch_shapes=[
                pltpu.VMEM((H, tq, 128), jnp.float32),     # m (lane-dense)
                pltpu.VMEM((H, tq, 128), jnp.float32),     # l (lane-dense)
                pltpu.VMEM((H, tq, D), jnp.float32),       # acc (un-normalized out)
                pltpu.VMEM((tq, H * E), compute_dtype),    # scale * Q
            ],
        ),
        compiler_params=pltpu.CompilerParams(
            # B and the q-tile axis shard across cores (v7x has 2 TCs);
            # the kv (reduction) axis must stay "arbitrary".
            dimension_semantics=("parallel", "parallel", "arbitrary"),
            vmem_limit_bytes=int(vmem_limit_bytes),
        ),
    )(q, k, v)

    return out.reshape(B, L, H, D)


def full_attention_ref(queries, keys, values, scale=None):
    B, L, H, E = queries.shape
    scale = (1.0 / math.sqrt(E)) if scale is None else scale
    scores = jnp.einsum("blhe,bshe->bhls", queries, keys)
    a = jax.nn.softmax(scale * scores, axis=-1)
    return jnp.einsum("bhls,bshd->blhd", a, values)


if __name__ == "__main__":
    # Small shapes, but large enough to exercise the flash tiling:
    # with q_tile=kv_tile=16 the grid is (2, 2, 2), so the online-softmax
    # kv loop and the q-tile axis both get more than one step.
    B, L, S, H, E, D = 2, 32, 32, 4, 32, 32
    key = jax.random.PRNGKey(0)
    kq, kk, kv = jax.random.split(key, 3)
    queries = jax.random.normal(kq, (B, L, H, E), dtype=jnp.float32)
    keys = jax.random.normal(kk, (B, S, H, E), dtype=jnp.float32)
    values = jax.random.normal(kv, (B, S, H, D), dtype=jnp.float32)

    out = full_attention(queries, keys, values, q_tile=16, kv_tile=16)
    out = jax.block_until_ready(out)

    ref = full_attention_ref(queries, keys, values)
    assert out.shape == (B, L, H, D)
    # Tolerance loosened slightly vs pure-f32 one-shot softmax because the
    # epilogue uses the EUP approximate reciprocal.
    err = float(jnp.max(jnp.abs(out - ref)))
    assert jnp.allclose(out, ref, atol=2e-3, rtol=2e-3), err

    print("KERNEL_OK")
</pallas_src>

<mosaic_0001>
module attributes {stable_mosaic.version = 11 : i64} {
  func.func @_flash_attn_kernel(%arg0: i32, %arg1: i32, %arg2: i32, %arg3: memref<1x16x128xf32, #tpu.memory_space<vmem>>, %arg4: memref<1x16x128xf32, #tpu.memory_space<vmem>>, %arg5: memref<1x16x128xf32, #tpu.memory_space<vmem>>, %arg6: memref<1x16x128xf32, #tpu.memory_space<vmem>>, %arg7: memref<4x16x128xf32, #tpu.memory_space<vmem>>, %arg8: memref<4x16x128xf32, #tpu.memory_space<vmem>>, %arg9: memref<4x16x32xf32, #tpu.memory_space<vmem>>, %arg10: memref<16x128xf32, #tpu.memory_space<vmem>>) attributes {dimension_semantics = [#tpu.dimension_semantics<parallel>, #tpu.dimension_semantics<parallel>, #tpu.dimension_semantics<arbitrary>], iteration_bounds = array<i64: 2, 2, 2>, scalar_prefetch = 0 : i64, scratch_operands = 4 : i64, tpu.core_type = #tpu.core_type<tc>, window_params = [{transform_indices = @transform_0, window_bounds = array<i64: 1, 16, 128>}, {transform_indices = @transform_1, window_bounds = array<i64: 1, 16, 128>}, {transform_indices = @transform_2, window_bounds = array<i64: 1, 16, 128>}, {transform_indices = @transform_3, window_bounds = array<i64: 1, 16, 128>}]} {
    %c0_i32 = arith.constant 0 : i32
    %0 = arith.cmpi eq, %arg2, %c0_i32 : i32
    %1 = arith.extui %0 : i1 to i32
    %c0_i32_0 = arith.constant 0 : i32
    %2 = arith.cmpi ne, %1, %c0_i32_0 : i32
    scf.if %2 {
      %cst_114 = arith.constant 0xFF800000 : f32
      %174 = vector.broadcast %cst_114 : f32 to vector<4x16x128xf32>
      %c0_115 = arith.constant 0 : index
      %c0_116 = arith.constant 0 : index
      %c0_117 = arith.constant 0 : index
      %175 = vector.load %arg7[%c0_115, %c0_116, %c0_117] : memref<4x16x128xf32, #tpu.memory_space<vmem>>, vector<4x16x128xf32>
      tpu.vector_store %arg7[%c0_115, %c0_116, %c0_117], %174 {strides = array<i32>} : memref<4x16x128xf32, #tpu.memory_space<vmem>>, vector<4x16x128xf32>,
      %cst_118 = arith.constant 0.000000e+00 : f32
      %176 = vector.broadcast %cst_118 : f32 to vector<4x16x128xf32>
      %c0_119 = arith.constant 0 : index
      %c0_120 = arith.constant 0 : index
      %c0_121 = arith.constant 0 : index
      %177 = vector.load %arg8[%c0_119, %c0_120, %c0_121] : memref<4x16x128xf32, #tpu.memory_space<vmem>>, vector<4x16x128xf32>
      tpu.vector_store %arg8[%c0_119, %c0_120, %c0_121], %176 {strides = array<i32>} : memref<4x16x128xf32, #tpu.memory_space<vmem>>, vector<4x16x128xf32>,
      %cst_122 = arith.constant 0.000000e+00 : f32
      %178 = vector.broadcast %cst_122 : f32 to vector<4x16x32xf32>
      %c0_123 = arith.constant 0 : index
      %c0_124 = arith.constant 0 : index
      %c0_125 = arith.constant 0 : index
      %179 = vector.load %arg9[%c0_123, %c0_124, %c0_125] : memref<4x16x32xf32, #tpu.memory_space<vmem>>, vector<4x16x32xf32>
      tpu.vector_store %arg9[%c0_123, %c0_124, %c0_125], %178 {strides = array<i32>} : memref<4x16x32xf32, #tpu.memory_space<vmem>>, vector<4x16x32xf32>,
      %c0_126 = arith.constant 0 : index
      %c0_127 = arith.constant 0 : index
      %c0_128 = arith.constant 0 : index
      %180 = vector.load %arg3[%c0_126, %c0_127, %c0_128] : memref<1x16x128xf32, #tpu.memory_space<vmem>>, vector<1x16x128xf32>
      %181 = vector.shape_cast %180 : vector<1x16x128xf32> to vector<16x128xf32>
      %cst_129 = arith.constant 0.176776692 : f32
      %182 = vector.broadcast %cst_129 : f32 to vector<16x128xf32>
      %183 = arith.mulf %181, %182 : vector<16x128xf32>
      %c0_130 = arith.constant 0 : index
      %c0_131 = arith.constant 0 : index
      %184 = vector.load %arg10[%c0_130, %c0_131] : memref<16x128xf32, #tpu.memory_space<vmem>>, vector<16x128xf32>
      tpu.vector_store %arg10[%c0_130, %c0_131], %183 {strides = array<i32>} : memref<16x128xf32, #tpu.memory_space<vmem>>, vector<16x128xf32>,
    } else {
    }
    %c0 = arith.constant 0 : index
    %c0_1 = arith.constant 0 : index
    %3 = vector.load %arg10[%c0, %c0_1] : memref<16x128xf32, #tpu.memory_space<vmem>>, vector<16x32xf32>
    %c0_2 = arith.constant 0 : index
    %c0_3 = arith.constant 0 : index
    %c0_4 = arith.constant 0 : index
    %4 = vector.load %arg4[%c0_2, %c0_3, %c0_4] : memref<1x16x128xf32, #tpu.memory_space<vmem>>, vector<1x16x32xf32>
    %5 = vector.shape_cast %4 : vector<1x16x32xf32> to vector<16x32xf32>
    %c0_5 = arith.constant 0 : index
    %c0_6 = arith.constant 0 : index
    %c0_7 = arith.constant 0 : index
    %6 = vector.load %arg5[%c0_5, %c0_6, %c0_7] : memref<1x16x128xf32, #tpu.memory_space<vmem>>, vector<1x16x32xf32>
    %7 = vector.shape_cast %6 : vector<1x16x32xf32> to vector<16x32xf32>
    %cst = arith.constant dense<0.000000e+00> : vector<16x16xf32>
    %8 = tpu.matmul %3, %5, %cst {dimension_numbers = #tpu.dot_dimension_numbers<[1], [1], [0], [0], [0, 0, 1, 0], [], []>} : vector<16x32xf32>, vector<16x32xf32>, vector<16x16xf32> -> vector<16x16xf32>
    %c0_8 = arith.constant 0 : index
    %c0_9 = arith.constant 0 : index
    %c0_10 = arith.constant 0 : index
    %9 = vector.load %arg7[%c0_8, %c0_9, %c0_10] : memref<4x16x128xf32, #tpu.memory_space<vmem>>, vector<1x16x128xf32>
    %10 = vector.shape_cast %9 : vector<1x16x128xf32> to vector<16x128xf32>
    %c0_11 = arith.constant 0 : index
    %c0_12 = arith.constant 0 : index
    %c0_13 = arith.constant 0 : index
    %11 = vector.load %arg8[%c0_11, %c0_12, %c0_13] : memref<4x16x128xf32, #tpu.memory_space<vmem>>, vector<1x16x128xf32>
    %12 = vector.shape_cast %11 : vector<1x16x128xf32> to vector<16x128xf32>
    %cst_14 = arith.constant dense<0xFF800000> : vector<16xf32>
    %13 = vector.multi_reduction <maximumf>, %8, %cst_14 [1] : vector<16x16xf32> to vector<16xf32>
    %14 = vector.shape_cast %13 : vector<16xf32> to vector<16x1xf32>
    %15 = vector.broadcast %14 : vector<16x1xf32> to vector<16x128xf32>
    %16 = arith.maximumf %10, %15 : vector<16x128xf32>
    %17 = vector.extract_strided_slice %16 {offsets = [0, 0], sizes = [16, 1], strides = [1, 1]} : vector<16x128xf32> to vector<16x1xf32>
    %18 = vector.extract_strided_slice %10 {offsets = [0, 0], sizes = [16, 1], strides = [1, 1]} : vector<16x128xf32> to vector<16x1xf32>
    %19 = arith.subf %18, %17 : vector<16x1xf32>
    %20 = math.exp %19 : vector<16x1xf32>
    %21 = vector.broadcast %17 : vector<16x1xf32> to vector<16x16xf32>
    %22 = arith.subf %8, %21 : vector<16x16xf32>
    %23 = math.exp %22 : vector<16x16xf32>
    %cst_15 = arith.constant dense<0.000000e+00> : vector<16xf32>
    %24 = vector.multi_reduction <add>, %23, %cst_15 [1] : vector<16x16xf32> to vector<16xf32>
    %25 = vector.shape_cast %24 : vector<16xf32> to vector<16x1xf32>
    %26 = vector.broadcast %20 : vector<16x1xf32> to vector<16x128xf32>
    %27 = arith.mulf %26, %12 : vector<16x128xf32>
    %28 = vector.broadcast %25 : vector<16x1xf32> to vector<16x128xf32>
    %29 = arith.addf %27, %28 : vector<16x128xf32>
    %c0_16 = arith.constant 0 : index
    %c0_17 = arith.constant 0 : index
    %c0_18 = arith.constant 0 : index
    %30 = vector.load %arg8[%c0_16, %c0_17, %c0_18] : memref<4x16x128xf32, #tpu.memory_space<vmem>>, vector<1x16x128xf32>
    %31 = vector.shape_cast %30 : vector<1x16x128xf32> to vector<16x128xf32>
    %32 = vector.shape_cast %29 : vector<16x128xf32> to vector<1x16x128xf32>
    tpu.vector_store %arg8[%c0_16, %c0_17, %c0_18], %32 {strides = array<i32>} : memref<4x16x128xf32, #tpu.memory_space<vmem>>, vector<1x16x128xf32>,
    %c0_19 = arith.constant 0 : index
    %c0_20 = arith.constant 0 : index
    %c0_21 = arith.constant 0 : index
    %33 = vector.load %arg9[%c0_19, %c0_20, %c0_21] : memref<4x16x32xf32, #tpu.memory_space<vmem>>, vector<1x16x32xf32>
    %34 = vector.shape_cast %33 : vector<1x16x32xf32> to vector<16x32xf32>
    %35 = vector.broadcast %20 : vector<16x1xf32> to vector<16x32xf32>
    %36 = arith.mulf %35, %34 : vector<16x32xf32>
    %cst_22 = arith.constant dense<0.000000e+00> : vector<16x32xf32>
    %37 = tpu.matmul %23, %7, %cst_22 {dimension_numbers = #tpu.dot_dimension_numbers<[1], [0], [0], [1], [0, 0, 1, 1], [], []>} : vector<16x16xf32>, vector<16x32xf32>, vector<16x32xf32> -> vector<16x32xf32>
    %38 = arith.addf %36, %37 : vector<16x32xf32>
    %c0_23 = arith.constant 0 : index
    %c0_24 = arith.constant 0 : index
    %c0_25 = arith.constant 0 : index
    %39 = vector.load %arg9[%c0_23, %c0_24, %c0_25] : memref<4x16x32xf32, #tpu.memory_space<vmem>>, vector<1x16x32xf32>
    %40 = vector.shape_cast %39 : vector<1x16x32xf32> to vector<16x32xf32>
    %41 = vector.shape_cast %38 : vector<16x32xf32> to vector<1x16x32xf32>
    tpu.vector_store %arg9[%c0_23, %c0_24, %c0_25], %41 {strides = array<i32>} : memref<4x16x32xf32, #tpu.memory_space<vmem>>, vector<1x16x32xf32>,
    %c0_26 = arith.constant 0 : index
    %c0_27 = arith.constant 0 : index
    %c0_28 = arith.constant 0 : index
    %42 = vector.load %arg7[%c0_26, %c0_27, %c0_28] : memref<4x16x128xf32, #tpu.memory_space<vmem>>, vector<1x16x128xf32>
    %43 = vector.shape_cast %42 : vector<1x16x128xf32> to vector<16x128xf32>
    %44 = vector.shape_cast %16 : vector<16x128xf32> to vector<1x16x128xf32>
    tpu.vector_store %arg7[%c0_26, %c0_27, %c0_28], %44 {strides = array<i32>} : memref<4x16x128xf32, #tpu.memory_space<vmem>>, vector<1x16x128xf32>,
    %c0_29 = arith.constant 0 : index
    %c32 = arith.constant 32 : index
    %45 = vector.load %arg10[%c0_29, %c32] : memref<16x128xf32, #tpu.memory_space<vmem>>, vector<16x32xf32>
    %c0_30 = arith.constant 0 : index
    %c0_31 = arith.constant 0 : index
    %c32_32 = arith.constant 32 : index
    %46 = vector.load %arg4[%c0_30, %c0_31, %c32_32] : memref<1x16x128xf32, #tpu.memory_space<vmem>>, vector<1x16x32xf32>
    %47 = vector.shape_cast %46 : vector<1x16x32xf32> to vector<16x32xf32>
    %c0_33 = arith.constant 0 : index
    %c0_34 = arith.constant 0 : index
    %c32_35 = arith.constant 32 : index
    %48 = vector.load %arg5[%c0_33, %c0_34, %c32_35] : memref<1x16x128xf32, #tpu.memory_space<vmem>>, vector<1x16x32xf32>
    %49 = vector.shape_cast %48 : vector<1x16x32xf32> to vector<16x32xf32>
    %cst_36 = arith.constant dense<0.000000e+00> : vector<16x16xf32>
    %50 = tpu.matmul %45, %47, %cst_36 {dimension_numbers = #tpu.dot_dimension_numbers<[1], [1], [0], [0], [0, 0, 1, 0], [], []>} : vector<16x32xf32>, vector<16x32xf32>, vector<16x16xf32> -> vector<16x16xf32>
    %c1 = arith.constant 1 : index
    %c0_37 = arith.constant 0 : index
    %c0_38 = arith.constant 0 : index
    %51 = vector.load %arg7[%c1, %c0_37, %c0_38] : memref<4x16x128xf32, #tpu.memory_space<vmem>>, vector<1x16x128xf32>
    %52 = vector.shape_cast %51 : vector<1x16x128xf32> to vector<16x128xf32>
    %c1_39 = arith.constant 1 : index
    %c0_40 = arith.constant 0 : index
    %c0_41 = arith.constant 0 : index
    %53 = vector.load %arg8[%c1_39, %c0_40, %c0_41] : memref<4x16x128xf32, #tpu.memory_space<vmem>>, vector<1x16x128xf32>
    %54 = vector.shape_cast %53 : vector<1x16x128xf32> to vector<16x128xf32>
    %cst_42 = arith.constant dense<0xFF800000> : vector<16xf32>
    %55 = vector.multi_reduction <maximumf>, %50, %cst_42 [1] : vector<16x16xf32> to vector<16xf32>
    %56 = vector.shape_cast %55 : vector<16xf32> to vector<16x1xf32>
    %57 = vector.broadcast %56 : vector<16x1xf32> to vector<16x128xf32>
    %58 = arith.maximumf %52, %57 : vector<16x128xf32>
    %59 = vector.extract_strided_slice %58 {offsets = [0, 0], sizes = [16, 1], strides = [1, 1]} : vector<16x128xf32> to vector<16x1xf32>
    %60 = vector.extract_strided_slice %52 {offsets = [0, 0], sizes = [16, 1], strides = [1, 1]} : vector<16x128xf32> to vector<16x1xf32>
    %61 = arith.subf %60, %59 : vector<16x1xf32>
    %62 = math.exp %61 : vector<16x1xf32>
    %63 = vector.broadcast %59 : vector<16x1xf32> to vector<16x16xf32>
    %64 = arith.subf %50, %63 : vector<16x16xf32>
    %65 = math.exp %64 : vector<16x16xf32>
    %cst_43 = arith.constant dense<0.000000e+00> : vector<16xf32>
    %66 = vector.multi_reduction <add>, %65, %cst_43 [1] : vector<16x16xf32> to vector<16xf32>
    %67 = vector.shape_cast %66 : vector<16xf32> to vector<16x1xf32>
    %68 = vector.broadcast %62 : vector<16x1xf32> to vector<16x128xf32>
    %69 = arith.mulf %68, %54 : vector<16x128xf32>
    %70 = vector.broadcast %67 : vector<16x1xf32> to vector<16x128xf32>
    %71 = arith.addf %69, %70 : vector<16x128xf32>
    %c1_44 = arith.constant 1 : index
    %c0_45 = arith.constant 0 : index
    %c0_46 = arith.constant 0 : index
    %72 = vector.load %arg8[%c1_44, %c0_45, %c0_46] : memref<4x16x128xf32, #tpu.memory_space<vmem>>, vector<1x16x128xf32>
    %73 = vector.shape_cast %72 : vector<1x16x128xf32> to vector<16x128xf32>
    %74 = vector.shape_cast %71 : vector<16x128xf32> to vector<1x16x128xf32>
    tpu.vector_store %arg8[%c1_44, %c0_45, %c0_46], %74 {strides = array<i32>} : memref<4x16x128xf32, #tpu.memory_space<vmem>>, vector<1x16x128xf32>,
    %c1_47 = arith.constant 1 : index
    %c0_48 = arith.constant 0 : index
    %c0_49 = arith.constant 0 : index
    %75 = vector.load %arg9[%c1_47, %c0_48, %c0_49] : memref<4x16x32xf32, #tpu.memory_space<vmem>>, vector<1x16x32xf32>
    %76 = vector.shape_cast %75 : vector<1x16x32xf32> to vector<16x32xf32>
    %77 = vector.broadcast %62 : vector<16x1xf32> to vector<16x32xf32>
    %78 = arith.mulf %77, %76 : vector<16x32xf32>
    %cst_50 = arith.constant dense<0.000000e+00> : vector<16x32xf32>
    %79 = tpu.matmul %65, %49, %cst_50 {dimension_numbers = #tpu.dot_dimension_numbers<[1], [0], [0], [1], [0, 0, 1, 1], [], []>} : vector<16x16xf32>, vector<16x32xf32>, vector<16x32xf32> -> vector<16x32xf32>
    %80 = arith.addf %78, %79 : vector<16x32xf32>
    %c1_51 = arith.constant 1 : index
    %c0_52 = arith.constant 0 : index
    %c0_53 = arith.constant 0 : index
    %81 = vector.load %arg9[%c1_51, %c0_52, %c0_53] : memref<4x16x32xf32, #tpu.memory_space<vmem>>, vector<1x16x32xf32>
    %82 = vector.shape_cast %81 : vector<1x16x32xf32> to vector<16x32xf32>
    %83 = vector.shape_cast %80 : vector<16x32xf32> to vector<1x16x32xf32>
    tpu.vector_store %arg9[%c1_51, %c0_52, %c0_53], %83 {strides = array<i32>} : memref<4x16x32xf32, #tpu.memory_space<vmem>>, vector<1x16x32xf32>,
    %c1_54 = arith.constant 1 : index
    %c0_55 = arith.constant 0 : index
    %c0_56 = arith.constant 0 : index
    %84 = vector.load %arg7[%c1_54, %c0_55, %c0_56] : memref<4x16x128xf32, #tpu.memory_space<vmem>>, vector<1x16x128xf32>
    %85 = vector.shape_cast %84 : vector<1x16x128xf32> to vector<16x128xf32>
    %86 = vector.shape_cast %58 : vector<16x128xf32> to vector<1x16x128xf32>
    tpu.vector_store %arg7[%c1_54, %c0_55, %c0_56], %86 {strides = array<i32>} : memref<4x16x128xf32, #tpu.memory_space<vmem>>, vector<1x16x128xf32>,
    %c0_57 = arith.constant 0 : index
    %c64 = arith.constant 64 : index
    %87 = vector.load %arg10[%c0_57, %c64] : memref<16x128xf32, #tpu.memory_space<vmem>>, vector<16x32xf32>
    %c0_58 = arith.constant 0 : index
    %c0_59 = arith.constant 0 : index
    %c64_60 = arith.constant 64 : index
    %88 = vector.load %arg4[%c0_58, %c0_59, %c64_60] : memref<1x16x128xf32, #tpu.memory_space<vmem>>, vector<1x16x32xf32>
    %89 = vector.shape_cast %88 : vector<1x16x32xf32> to vector<16x32xf32>
    %c0_61 = arith.constant 0 : index
    %c0_62 = arith.constant 0 : index
    %c64_63 = arith.constant 64 : index
    %90 = vector.load %arg5[%c0_61, %c0_62, %c64_63] : memref<1x16x128xf32, #tpu.memory_space<vmem>>, vector<1x16x32xf32>
    %91 = vector.shape_cast %90 : vector<1x16x32xf32> to vector<16x32xf32>
    %cst_64 = arith.constant dense<0.000000e+00> : vector<16x16xf32>
    %92 = tpu.matmul %87, %89, %cst_64 {dimension_numbers = #tpu.dot_dimension_numbers<[1], [1], [0], [0], [0, 0, 1, 0], [], []>} : vector<16x32xf32>, vector<16x32xf32>, vector<16x16xf32> -> vector<16x16xf32>
    %c2 = arith.constant 2 : index
    %c0_65 = arith.constant 0 : index
    %c0_66 = arith.constant 0 : index
    %93 = vector.load %arg7[%c2, %c0_65, %c0_66] : memref<4x16x128xf32, #tpu.memory_space<vmem>>, vector<1x16x128xf32>
    %94 = vector.shape_cast %93 : vector<1x16x128xf32> to vector<16x128xf32>
    %c2_67 = arith.constant 2 : index
    %c0_68 = arith.constant 0 : index
    %c0_69 = arith.constant 0 : index
    %95 = vector.load %arg8[%c2_67, %c0_68, %c0_69] : memref<4x16x128xf32, #tpu.memory_space<vmem>>, vector<1x16x128xf32>
    %96 = vector.shape_cast %95 : vector<1x16x128xf32> to vector<16x128xf32>
    %cst_70 = arith.constant dense<0xFF800000> : vector<16xf32>
    %97 = vector.multi_reduction <maximumf>, %92, %cst_70 [1] : vector<16x16xf32> to vector<16xf32>
    %98 = vector.shape_cast %97 : vector<16xf32> to vector<16x1xf32>
    %99 = vector.broadcast %98 : vector<16x1xf32> to vector<16x128xf32>
    %100 = arith.maximumf %94, %99 : vector<16x128xf32>
    %101 = vector.extract_strided_slice %100 {offsets = [0, 0], sizes = [16, 1], strides = [1, 1]} : vector<16x128xf32> to vector<16x1xf32>
    %102 = vector.extract_strided_slice %94 {offsets = [0, 0], sizes = [16, 1], strides = [1, 1]} : vector<16x128xf32> to vector<16x1xf32>
    %103 = arith.subf %102, %101 : vector<16x1xf32>
    %104 = math.exp %103 : vector<16x1xf32>
    %105 = vector.broadcast %101 : vector<16x1xf32> to vector<16x16xf32>
    %106 = arith.subf %92, %105 : vector<16x16xf32>
    %107 = math.exp %106 : vector<16x16xf32>
    %cst_71 = arith.constant dense<0.000000e+00> : vector<16xf32>
    %108 = vector.multi_reduction <add>, %107, %cst_71 [1] : vector<16x16xf32> to vector<16xf32>
    %109 = vector.shape_cast %108 : vector<16xf32> to vector<16x1xf32>
    %110 = vector.broadcast %104 : vector<16x1xf32> to vector<16x128xf32>
    %111 = arith.mulf %110, %96 : vector<16x128xf32>
    %112 = vector.broadcast %109 : vector<16x1xf32> to vector<16x128xf32>
    %113 = arith.addf %111, %112 : vector<16x128xf32>
    %c2_72 = arith.constant 2 : index
    %c0_73 = arith.constant 0 : index
    %c0_74 = arith.constant 0 : index
    %114 = vector.load %arg8[%c2_72, %c0_73, %c0_74] : memref<4x16x128xf32, #tpu.memory_space<vmem>>, vector<1x16x128xf32>
    %115 = vector.shape_cast %114 : vector<1x16x128xf32> to vector<16x128xf32>
    %116 = vector.shape_cast %113 : vector<16x128xf32> to vector<1x16x128xf32>
    tpu.vector_store %arg8[%c2_72, %c0_73, %c0_74], %116 {strides = array<i32>} : memref<4x16x128xf32, #tpu.memory_space<vmem>>, vector<1x16x128xf32>,
    %c2_75 = arith.constant 2 : index
    %c0_76 = arith.constant 0 : index
    %c0_77 = arith.constant 0 : index
    %117 = vector.load %arg9[%c2_75, %c0_76, %c0_77] : memref<4x16x32xf32, #tpu.memory_space<vmem>>, vector<1x16x32xf32>
    %118 = vector.shape_cast %117 : vector<1x16x32xf32> to vector<16x32xf32>
    %119 = vector.broadcast %104 : vector<16x1xf32> to vector<16x32xf32>
    %120 = arith.mulf %119, %118 : vector<16x32xf32>
    %cst_78 = arith.constant dense<0.000000e+00> : vector<16x32xf32>
    %121 = tpu.matmul %107, %91, %cst_78 {dimension_numbers = #tpu.dot_dimension_numbers<[1], [0], [0], [1], [0, 0, 1, 1], [], []>} : vector<16x16xf32>, vector<16x32xf32>, vector<16x32xf32> -> vector<16x32xf32>
    %122 = arith.addf %120, %121 : vector<16x32xf32>
    %c2_79 = arith.constant 2 : index
    %c0_80 = arith.constant 0 : index
    %c0_81 = arith.constant 0 : index
    %123 = vector.load %arg9[%c2_79, %c0_80, %c0_81] : memref<4x16x32xf32, #tpu.memory_space<vmem>>, vector<1x16x32xf32>
    %124 = vector.shape_cast %123 : vector<1x16x32xf32> to vector<16x32xf32>
    %125 = vector.shape_cast %122 : vector<16x32xf32> to vector<1x16x32xf32>
    tpu.vector_store %arg9[%c2_79, %c0_80, %c0_81], %125 {strides = array<i32>} : memref<4x16x32xf32, #tpu.memory_space<vmem>>, vector<1x16x32xf32>,
    %c2_82 = arith.constant 2 : index
    %c0_83 = arith.constant 0 : index
    %c0_84 = arith.constant 0 : index
    %126 = vector.load %arg7[%c2_82, %c0_83, %c0_84] : memref<4x16x128xf32, #tpu.memory_space<vmem>>, vector<1x16x128xf32>
    %127 = vector.shape_cast %126 : vector<1x16x128xf32> to vector<16x128xf32>
    %128 = vector.shape_cast %100 : vector<16x128xf32> to vector<1x16x128xf32>
    tpu.vector_store %arg7[%c2_82, %c0_83, %c0_84], %128 {strides = array<i32>} : memref<4x16x128xf32, #tpu.memory_space<vmem>>, vector<1x16x128xf32>,
    %c0_85 = arith.constant 0 : index
    %c96 = arith.constant 96 : index
    %129 = vector.load %arg10[%c0_85, %c96] : memref<16x128xf32, #tpu.memory_space<vmem>>, vector<16x32xf32>
    %c0_86 = arith.constant 0 : index
    %c0_87 = arith.constant 0 : index
    %c96_88 = arith.constant 96 : index
    %130 = vector.load %arg4[%c0_86, %c0_87, %c96_88] : memref<1x16x128xf32, #tpu.memory_space<vmem>>, vector<1x16x32xf32>
    %131 = vector.shape_cast %130 : vector<1x16x32xf32> to vector<16x32xf32>
    %c0_89 = arith.constant 0 : index
    %c0_90 = arith.constant 0 : index
    %c96_91 = arith.constant 96 : index
    %132 = vector.load %arg5[%c0_89, %c0_90, %c96_91] : memref<1x16x128xf32, #tpu.memory_space<vmem>>, vector<1x16x32xf32>
    %133 = vector.shape_cast %132 : vector<1x16x32xf32> to vector<16x32xf32>
    %cst_92 = arith.constant dense<0.000000e+00> : vector<16x16xf32>
    %134 = tpu.matmul %129, %131, %cst_92 {dimension_numbers = #tpu.dot_dimension_numbers<[1], [1], [0], [0], [0, 0, 1, 0], [], []>} : vector<16x32xf32>, vector<16x32xf32>, vector<16x16xf32> -> vector<16x16xf32>
    %c3 = arith.constant 3 : index
    %c0_93 = arith.constant 0 : index
    %c0_94 = arith.constant 0 : index
    %135 = vector.load %arg7[%c3, %c0_93, %c0_94] : memref<4x16x128xf32, #tpu.memory_space<vmem>>, vector<1x16x128xf32>
    %136 = vector.shape_cast %135 : vector<1x16x128xf32> to vector<16x128xf32>
    %c3_95 = arith.constant 3 : index
    %c0_96 = arith.constant 0 : index
    %c0_97 = arith.constant 0 : index
    %137 = vector.load %arg8[%c3_95, %c0_96, %c0_97] : memref<4x16x128xf32, #tpu.memory_space<vmem>>, vector<1x16x128xf32>
    %138 = vector.shape_cast %137 : vector<1x16x128xf32> to vector<16x128xf32>
    %cst_98 = arith.constant dense<0xFF800000> : vector<16xf32>
    %139 = vector.multi_reduction <maximumf>, %134, %cst_98 [1] : vector<16x16xf32> to vector<16xf32>
    %140 = vector.shape_cast %139 : vector<16xf32> to vector<16x1xf32>
    %141 = vector.broadcast %140 : vector<16x1xf32> to vector<16x128xf32>
    %142 = arith.maximumf %136, %141 : vector<16x128xf32>
    %143 = vector.extract_strided_slice %142 {offsets = [0, 0], sizes = [16, 1], strides = [1, 1]} : vector<16x128xf32> to vector<16x1xf32>
    %144 = vector.extract_strided_slice %136 {offsets = [0, 0], sizes = [16, 1], strides = [1, 1]} : vector<16x128xf32> to vector<16x1xf32>
    %145 = arith.subf %144, %143 : vector<16x1xf32>
    %146 = math.exp %145 : vector<16x1xf32>
    %147 = vector.broadcast %143 : vector<16x1xf32> to vector<16x16xf32>
    %148 = arith.subf %134, %147 : vector<16x16xf32>
    %149 = math.exp %148 : vector<16x16xf32>
    %cst_99 = arith.constant dense<0.000000e+00> : vector<16xf32>
    %150 = vector.multi_reduction <add>, %149, %cst_99 [1] : vector<16x16xf32> to vector<16xf32>
    %151 = vector.shape_cast %150 : vector<16xf32> to vector<16x1xf32>
    %152 = vector.broadcast %146 : vector<16x1xf32> to vector<16x128xf32>
    %153 = arith.mulf %152, %138 : vector<16x128xf32>
    %154 = vector.broadcast %151 : vector<16x1xf32> to vector<16x128xf32>
    %155 = arith.addf %153, %154 : vector<16x128xf32>
    %c3_100 = arith.constant 3 : index
    %c0_101 = arith.constant 0 : index
    %c0_102 = arith.constant 0 : index
    %156 = vector.load %arg8[%c3_100, %c0_101, %c0_102] : memref<4x16x128xf32, #tpu.memory_space<vmem>>, vector<1x16x128xf32>
    %157 = vector.shape_cast %156 : vector<1x16x128xf32> to vector<16x128xf32>
    %158 = vector.shape_cast %155 : vector<16x128xf32> to vector<1x16x128xf32>
    tpu.vector_store %arg8[%c3_100, %c0_101, %c0_102], %158 {strides = array<i32>} : memref<4x16x128xf32, #tpu.memory_space<vmem>>, vector<1x16x128xf32>,
    %c3_103 = arith.constant 3 : index
    %c0_104 = arith.constant 0 : index
    %c0_105 = arith.constant 0 : index
    %159 = vector.load %arg9[%c3_103, %c0_104, %c0_105] : memref<4x16x32xf32, #tpu.memory_space<vmem>>, vector<1x16x32xf32>
    %160 = vector.shape_cast %159 : vector<1x16x32xf32> to vector<16x32xf32>
    %161 = vector.broadcast %146 : vector<16x1xf32> to vector<16x32xf32>
    %162 = arith.mulf %161, %160 : vector<16x32xf32>
    %cst_106 = arith.constant dense<0.000000e+00> : vector<16x32xf32>
    %163 = tpu.matmul %149, %133, %cst_106 {dimension_numbers = #tpu.dot_dimension_numbers<[1], [0], [0], [1], [0, 0, 1, 1], [], []>} : vector<16x16xf32>, vector<16x32xf32>, vector<16x32xf32> -> vector<16x32xf32>
    %164 = arith.addf %162, %163 : vector<16x32xf32>
    %c3_107 = arith.constant 3 : index
    %c0_108 = arith.constant 0 : index
    %c0_109 = arith.constant 0 : index
    %165 = vector.load %arg9[%c3_107, %c0_108, %c0_109] : memref<4x16x32xf32, #tpu.memory_space<vmem>>, vector<1x16x32xf32>
    %166 = vector.shape_cast %165 : vector<1x16x32xf32> to vector<16x32xf32>
    %167 = vector.shape_cast %164 : vector<16x32xf32> to vector<1x16x32xf32>
    tpu.vector_store %arg9[%c3_107, %c0_108, %c0_109], %167 {strides = array<i32>} : memref<4x16x32xf32, #tpu.memory_space<vmem>>, vector<1x16x32xf32>,
    %c3_110 = arith.constant 3 : index
    %c0_111 = arith.constant 0 : index
    %c0_112 = arith.constant 0 : index
    %168 = vector.load %arg7[%c3_110, %c0_111, %c0_112] : memref<4x16x128xf32, #tpu.memory_space<vmem>>, vector<1x16x128xf32>
    %169 = vector.shape_cast %168 : vector<1x16x128xf32> to vector<16x128xf32>
    %170 = vector.shape_cast %142 : vector<16x128xf32> to vector<1x16x128xf32>
    tpu.vector_store %arg7[%c3_110, %c0_111, %c0_112], %170 {strides = array<i32>} : memref<4x16x128xf32, #tpu.memory_space<vmem>>, vector<1x16x128xf32>,
    %c1_i32 = arith.constant 1 : i32
    %171 = arith.cmpi eq, %arg2, %c1_i32 : i32
    %172 = arith.extui %171 : i1 to i32
    %c0_i32_113 = arith.constant 0 : i32
    %173 = arith.cmpi ne, %172, %c0_i32_113 : i32
    scf.if %173 {
      %c0_114 = arith.constant 0 : index
      %c0_115 = arith.constant 0 : index
      %c0_116 = arith.constant 0 : index
      %174 = vector.load %arg8[%c0_114, %c0_115, %c0_116] : memref<4x16x128xf32, #tpu.memory_space<vmem>>, vector<1x16x128xf32>
      %175 = vector.shape_cast %174 : vector<1x16x128xf32> to vector<16x128xf32>
      %176 = vector.extract_strided_slice %175 {offsets = [0, 0], sizes = [16, 1], strides = [1, 1]} : vector<16x128xf32> to vector<16x1xf32>
      %177 = tpu.reciprocal %176 {approx = true} : vector<16x1xf32> -> vector<16x1xf32>
      %c0_117 = arith.constant 0 : index
      %c0_118 = arith.constant 0 : index
      %c0_119 = arith.constant 0 : index
      %178 = vector.load %arg9[%c0_117, %c0_118, %c0_119] : memref<4x16x32xf32, #tpu.memory_space<vmem>>, vector<1x16x32xf32>
      %179 = vector.shape_cast %178 : vector<1x16x32xf32> to vector<16x32xf32>
      %180 = vector.broadcast %177 : vector<16x1xf32> to vector<16x32xf32>
      %181 = arith.mulf %179, %180 : vector<16x32xf32>
      %c0_120 = arith.constant 0 : index
      %c0_121 = arith.constant 0 : index
      %c0_122 = arith.constant 0 : index
      %182 = vector.load %arg6[%c0_120, %c0_121, %c0_122] : memref<1x16x128xf32, #tpu.memory_space<vmem>>, vector<1x16x32xf32>
      %183 = vector.shape_cast %182 : vector<1x16x32xf32> to vector<16x32xf32>
      %184 = vector.shape_cast %181 : vector<16x32xf32> to vector<1x16x32xf32>
      tpu.vector_store %arg6[%c0_120, %c0_121, %c0_122], %184 {strides = array<i32>} : memref<1x16x128xf32, #tpu.memory_space<vmem>>, vector<1x16x32xf32>,
      %c1_123 = arith.constant 1 : index
      %c0_124 = arith.constant 0 : index
      %c0_125 = arith.constant 0 : index
      %185 = vector.load %arg8[%c1_123, %c0_124, %c0_125] : memref<4x16x128xf32, #tpu.memory_space<vmem>>, vector<1x16x128xf32>
      %186 = vector.shape_cast %185 : vector<1x16x128xf32> to vector<16x128xf32>
      %187 = vector.extract_strided_slice %186 {offsets = [0, 0], sizes = [16, 1], strides = [1, 1]} : vector<16x128xf32> to vector<16x1xf32>
      %188 = tpu.reciprocal %187 {approx = true} : vector<16x1xf32> -> vector<16x1xf32>
      %c1_126 = arith.constant 1 : index
      %c0_127 = arith.constant 0 : index
      %c0_128 = arith.constant 0 : index
      %189 = vector.load %arg9[%c1_126, %c0_127, %c0_128] : memref<4x16x32xf32, #tpu.memory_space<vmem>>, vector<1x16x32xf32>
      %190 = vector.shape_cast %189 : vector<1x16x32xf32> to vector<16x32xf32>
      %191 = vector.broadcast %188 : vector<16x1xf32> to vector<16x32xf32>
      %192 = arith.mulf %190, %191 : vector<16x32xf32>
      %c0_129 = arith.constant 0 : index
      %c0_130 = arith.constant 0 : index
      %c32_131 = arith.constant 32 : index
      %193 = vector.load %arg6[%c0_129, %c0_130, %c32_131] : memref<1x16x128xf32, #tpu.memory_space<vmem>>, vector<1x16x32xf32>
      %194 = vector.shape_cast %193 : vector<1x16x32xf32> to vector<16x32xf32>
      %195 = vector.shape_cast %192 : vector<16x32xf32> to vector<1x16x32xf32>
      tpu.vector_store %arg6[%c0_129, %c0_130, %c32_131], %195 {strides = array<i32>} : memref<1x16x128xf32, #tpu.memory_space<vmem>>, vector<1x16x32xf32>,
      %c2_132 = arith.constant 2 : index
      %c0_133 = arith.constant 0 : index
      %c0_134 = arith.constant 0 : index
      %196 = vector.load %arg8[%c2_132, %c0_133, %c0_134] : memref<4x16x128xf32, #tpu.memory_space<vmem>>, vector<1x16x128xf32>
      %197 = vector.shape_cast %196 : vector<1x16x128xf32> to vector<16x128xf32>
      %198 = vector.extract_strided_slice %197 {offsets = [0, 0], sizes = [16, 1], strides = [1, 1]} : vector<16x128xf32> to vector<16x1xf32>
      %199 = tpu.reciprocal %198 {approx = true} : vector<16x1xf32> -> vector<16x1xf32>
      %c2_135 = arith.constant 2 : index
      %c0_136 = arith.constant 0 : index
      %c0_137 = arith.constant 0 : index
      %200 = vector.load %arg9[%c2_135, %c0_136, %c0_137] : memref<4x16x32xf32, #tpu.memory_space<vmem>>, vector<1x16x32xf32>
      %201 = vector.shape_cast %200 : vector<1x16x32xf32> to vector<16x32xf32>
      %202 = vector.broadcast %199 : vector<16x1xf32> to vector<16x32xf32>
      %203 = arith.mulf %201, %202 : vector<16x32xf32>
      %c0_138 = arith.constant 0 : index
      %c0_139 = arith.constant 0 : index
      %c64_140 = arith.constant 64 : index
      %204 = vector.load %arg6[%c0_138, %c0_139, %c64_140] : memref<1x16x128xf32, #tpu.memory_space<vmem>>, vector<1x16x32xf32>
      %205 = vector.shape_cast %204 : vector<1x16x32xf32> to vector<16x32xf32>
      %206 = vector.shape_cast %203 : vector<16x32xf32> to vector<1x16x32xf32>
      tpu.vector_store %arg6[%c0_138, %c0_139, %c64_140], %206 {strides = array<i32>} : memref<1x16x128xf32, #tpu.memory_space<vmem>>, vector<1x16x32xf32>,
      %c3_141 = arith.constant 3 : index
      %c0_142 = arith.constant 0 : index
      %c0_143 = arith.constant 0 : index
      %207 = vector.load %arg8[%c3_141, %c0_142, %c0_143] : memref<4x16x128xf32, #tpu.memory_space<vmem>>, vector<1x16x128xf32>
      %208 = vector.shape_cast %207 : vector<1x16x128xf32> to vector<16x128xf32>
      %209 = vector.extract_strided_slice %208 {offsets = [0, 0], sizes = [16, 1], strides = [1, 1]} : vector<16x128xf32> to vector<16x1xf32>
      %210 = tpu.reciprocal %209 {approx = true} : vector<16x1xf32> -> vector<16x1xf32>
      %c3_144 = arith.constant 3 : index
      %c0_145 = arith.constant 0 : index
      %c0_146 = arith.constant 0 : index
      %211 = vector.load %arg9[%c3_144, %c0_145, %c0_146] : memref<4x16x32xf32, #tpu.memory_space<vmem>>, vector<1x16x32xf32>
      %212 = vector.shape_cast %211 : vector<1x16x32xf32> to vector<16x32xf32>
      %213 = vector.broadcast %210 : vector<16x1xf32> to vector<16x32xf32>
      %214 = arith.mulf %212, %213 : vector<16x32xf32>
      %c0_147 = arith.constant 0 : index
      %c0_148 = arith.constant 0 : index
      %c96_149 = arith.constant 96 : index
      %215 = vector.load %arg6[%c0_147, %c0_148, %c96_149] : memref<1x16x128xf32, #tpu.memory_space<vmem>>, vector<1x16x32xf32>
      %216 = vector.shape_cast %215 : vector<1x16x32xf32> to vector<16x32xf32>
      %217 = vector.shape_cast %214 : vector<16x32xf32> to vector<1x16x32xf32>
      tpu.vector_store %arg6[%c0_147, %c0_148, %c96_149], %217 {strides = array<i32>} : memref<1x16x128xf32, #tpu.memory_space<vmem>>, vector<1x16x32xf32>,
    } else {
    }
    return
  }
  func.func @transform_0(%arg0: i32, %arg1: i32, %arg2: i32) -> (i32, i32, i32) {
    %c0_i32 = arith.constant 0 : i32
    %c0_i32_0 = arith.constant 0 : i32
    return %arg0, %arg1, %c0_i32 : i32, i32, i32
  }
  func.func @transform_1(%arg0: i32, %arg1: i32, %arg2: i32) -> (i32, i32, i32) {
    %c0_i32 = arith.constant 0 : i32
    %c0_i32_0 = arith.constant 0 : i32
    return %arg0, %arg2, %c0_i32 : i32, i32, i32
  }
  func.func @transform_2(%arg0: i32, %arg1: i32, %arg2: i32) -> (i32, i32, i32) {
    %c0_i32 = arith.constant 0 : i32
    %c0_i32_0 = arith.constant 0 : i32
    return %arg0, %arg2, %c0_i32 : i32, i32, i32
  }
  func.func @transform_3(%arg0: i32, %arg1: i32, %arg2: i32) -> (i32, i32, i32) {
    %c0_i32 = arith.constant 0 : i32
    %c0_i32_0 = arith.constant 0 : i32
    return %arg0, %arg1, %c0_i32 : i32, i32, i32
  }
}

</mosaic_0001>

<llo_original>
// kernel: tpu_custom_call.1
$region0: #{tpu_custom_call.1}
  #allocation0 [shape = 'u32[]', space=smem, size = 0x4, offset = 0x4, fixed_abs, tag = 'smem constant byte address 0x4 - core index']
  #allocation1 [shape = 'u32[144,128]{1,0:T(1,128)}', space=vmem, size = 0x12000, scoped, tag = 'internal scratch']
  #allocation2 [shape = 'f32[4,16,128]{2,1,0:T(8,128)}', space=vmem, size = 0x8000, scoped, tag = 'scratch operand']
  #allocation3 [shape = 'f32[4,16,128]{2,1,0:T(8,128)}', space=vmem, size = 0x8000, scoped, tag = 'scratch operand']
  #allocation4 [shape = 'f32[4,16,32]{2,1,0:T(8,128)}', space=vmem, size = 0x8000, scoped, tag = 'scratch operand']
  #allocation5 [shape = 'f32[16,128]{1,0:T(8,128)}', space=vmem, size = 0x2000, scoped, tag = 'scratch operand']
  %s0 = inlined_call_operand.hbm [shape: f32[2,32,128], index: 0, kind: input, shape index: {}]
  %s1 = inlined_call_operand.hbm [shape: f32[2,32,128], index: 1, kind: input, shape index: {}]
  %s2 = inlined_call_operand.hbm [shape: f32[2,32,128], index: 2, kind: input, shape index: {}]
  %s3 = inlined_call_operand.hbm [shape: f32[2,32,128], index: 3, kind: output, shape index: {}]
  %s4 = sld [smem:[#allocation0]]
  $region65: #{tpu_custom_call.1} parent=0
    _
  %s6 = ssub.s32 1, %s4
  %s7 = scalar_select 0, %s6, %s4
  $region1: #{tpu_custom_call.1} parent=0
    #allocation6 [shape = 'u8[16384]{0}', space=vmem, size = 0x4000, scoped, tag = 'input window, operand 0']
    #allocation7 [shape = 's32[2]{0}', space=sflag, size = 0x8, scoped, tag = 'scoped memory for tpu_custom_call.1']
    #allocation8 [shape = 's32[2]{0}', space=sflag, size = 0x8, scoped, tag = 'scoped memory for tpu_custom_call.1']
    #allocation9 [shape = 'u8[16384]{0}', space=vmem, size = 0x4000, scoped, tag = 'input window, operand 1']
    #allocation10 [shape = 's32[2]{0}', space=sflag, size = 0x8, scoped, tag = 'scoped memory for tpu_custom_call.1']
    #allocation11 [shape = 'u8[16384]{0}', space=vmem, size = 0x4000, scoped, tag = 'input window, operand 2']
    #allocation12 [shape = 'u8[16384]{0}', space=vmem, size = 0x4000, scoped, tag = 'output window, operand 0']
    %8 = vsyncpa [#allocation7], 0
    %s9 = scalar_lea.sflag [#allocation7], 1
    %10 = vsyncpa %s9, 0
    %11 = vsyncpa [#allocation10], 0
    %s12 = scalar_lea.sflag [#allocation10], 1
    %13 = vsyncpa %s12, 0
    %14 = vsyncpa [#allocation8], 0
    %s15 = scalar_lea.sflag [#allocation8], 1
    %16 = vsyncpa %s15, 0
    loop: start=0, step=1, limit=10
    $region2: #{tpu_custom_call.1} parent=1 // loop_pre_header
      _
    $region3: #{tpu_custom_call.1} parent=1 // loop_header
      %s18 = sphi 0, %s22
      %p19 = scmp.ge.s32.totalorder %s18, 10
      %s25 = sphi 0, %s44
      %s26 = sphi 0, %s40
      %s27 = sphi 0, %s36
      %s28 = sphi 0, %s25
      %s29 = sphi 0, %s26
      %s30 = sphi 0, %s27
      %s31 = sphi 0, %s28
      %s32 = sphi 0, %s29
      %s33 = sphi 0, %s30
      %s49 = sphi 0, %s51
      %s52 = sphi 0, %s49
      %s53 = sphi 0, %s52
      %s69 = sphi 0, %s53
      %s77 = sphi 0, %s79
      %s80 = sphi 0, %s77
      %s81 = sphi 0, %s80
      %s97 = sphi 0, %s81
      %s105 = sphi 0, %s107
      %s108 = sphi 0, %s105
      %s109 = sphi 0, %s108
      %s125 = sphi 0, %s109
      %s133 = sphi 0, %s135
      %s136 = sphi 0, %s133
      %s137 = sphi 0, %s136
      %s153 = sphi 0, %s137
    $region4: #{tpu_custom_call.1} parent=1 // loop_header_branch
      %21 = sbr.rel (%p19) target = $region8
    $region5: #{tpu_custom_call.1} parent=1 // loop_body
      %s23 = ssub.s32 %s18, 1
      %s24 = ssub.s32 %s18, 2
      %s34 = sadd.s32 1, %s27
      %p35 = scmp.ge.s32.totalorder %s34, 2
      %s36 = scalar_select %p35, 0, %s34
      %s37 = sadd.s32 1, %s26
      %s38 = scalar_select %p35, %s37, %s26
      %p39 = scmp.ge.s32.totalorder %s38, 2
      %s40 = scalar_select %p39, 0, %s38
      %s41 = sadd.s32 1, %s25
      %s42 = scalar_select %p39, %s41, %s25
      %p43 = scmp.ge.s32.totalorder %s42, 2
      %s44 = scalar_select %p43, 0, %s42
      %s45 = ssub.s32 %s25, %s44
      %s46 = ssub.s32 %s26, %s40
      %s47 = sor.u32 %s45, %s46
      %p48 = scmp.eq.s32.totalorder %s47, 0
      %s50 = sadd.s32 %s49, 1
      %s51 = scalar_select %p48, %s49, %s50
      %p54 = pneg %p48
      %p55 = scmp.eq.s32.totalorder %s18, 7
      %p56 = por %p54, %p55
      %p57 = scmp.ne.s32.totalorder %s49, %s52
      %p58 = scmp.eq.s32.totalorder %s18, 0
      %p59 = por %p57, %p58
      %p60 = scmp.ne.s32.totalorder %s49, %s52
      %p61 = scmp.eq.s32.totalorder %s23, 7
      %p62 = por %p60, %p61
      %p63 = scmp.ne.s32.totalorder %s52, %s53
      %p64 = scmp.eq.s32.totalorder %s23, 0
      %p65 = por %p63, %p64
      %p66 = scmp.ne.s32.totalorder %s52, %s53
      %p67 = scmp.eq.s32.totalorder %s24, 7
      %p68 = por %p66, %p67
      %p70 = scmp.ne.s32.totalorder %s53, %s69
      %p71 = scmp.eq.s32.totalorder %s24, 0
      %p72 = por %p70, %p71
      %s73 = ssub.s32 %s25, %s44
      %s74 = ssub.s32 %s27, %s36
      %s75 = sor.u32 %s73, %s74
      %p76 = scmp.eq.s32.totalorder %s75, 0
      %s78 = sadd.s32 %s77, 1
      %s79 = scalar_select %p76, %s77, %s78
      %p82 = pneg %p76
      %p83 = scmp.eq.s32.totalorder %s18, 7
      %p84 = por %p82, %p83
      %p85 = scmp.ne.s32.totalorder %s77, %s80
      %p86 = scmp.eq.s32.totalorder %s18, 0
      %p87 = por %p85, %p86
      %p88 = scmp.ne.s32.totalorder %s77, %s80
      %p89 = scmp.eq.s32.totalorder %s23, 7
      %p90 = por %p88, %p89
      %p91 = scmp.ne.s32.totalorder %s80, %s81
      %p92 = scmp.eq.s32.totalorder %s23, 0
      %p93 = por %p91, %p92
      %p94 = scmp.ne.s32.totalorder %s80, %s81
      %p95 = scmp.eq.s32.totalorder %s24, 7
      %p96 = por %p94, %p95
      %p98 = scmp.ne.s32.totalorder %s81, %s97
      %p99 = scmp.eq.s32.totalorder %s24, 0
      %p100 = por %p98, %p99
      %s101 = ssub.s32 %s25, %s44
      %s102 = ssub.s32 %s27, %s36
      %s103 = sor.u32 %s101, %s102
      %p104 = scmp.eq.s32.totalorder %s103, 0
      %s106 = sadd.s32 %s105, 1
      %s107 = scalar_select %p104, %s105, %s106
      %p110 = pneg %p104
      %p111 = scmp.eq.s32.totalorder %s18, 7
      %p112 = por %p110, %p111
      %p113 = scmp.ne.s32.totalorder %s105, %s108
      %p114 = scmp.eq.s32.totalorder %s18, 0
      %p115 = por %p113, %p114
      %p116 = scmp.ne.s32.totalorder %s105, %s108
      %p117 = scmp.eq.s32.totalorder %s23, 7
      %p118 = por %p116, %p117
      %p119 = scmp.ne.s32.totalorder %s108, %s109
      %p120 = scmp.eq.s32.totalorder %s23, 0
      %p121 = por %p119, %p120
      %p122 = scmp.ne.s32.totalorder %s108, %s109
      %p123 = scmp.eq.s32.totalorder %s24, 7
      %p124 = por %p122, %p123
      %p126 = scmp.ne.s32.totalorder %s109, %s125
      %p127 = scmp.eq.s32.totalorder %s24, 0
      %p128 = por %p126, %p127
      %s129 = ssub.s32 %s25, %s44
      %s130 = ssub.s32 %s26, %s40
      %s131 = sor.u32 %s129, %s130
      %p132 = scmp.eq.s32.totalorder %s131, 0
      %s134 = sadd.s32 %s133, 1
      %s135 = scalar_select %p132, %s133, %s134
      %p138 = pneg %p132
      %p139 = scmp.eq.s32.totalorder %s18, 7
      %p140 = por %p138, %p139
      %p141 = scmp.ne.s32.totalorder %s133, %s136
      %p142 = scmp.eq.s32.totalorder %s18, 0
      %p143 = por %p141, %p142
      %p144 = scmp.ne.s32.totalorder %s133, %s136
      %p145 = scmp.eq.s32.totalorder %s23, 7
      %p146 = por %p144, %p145
      %p147 = scmp.ne.s32.totalorder %s136, %s137
      %p148 = scmp.eq.s32.totalorder %s23, 0
      %p149 = por %p147, %p148
      %p150 = scmp.ne.s32.totalorder %s136, %s137
      %p151 = scmp.eq.s32.totalorder %s24, 7
      %p152 = por %p150, %p151
      %p154 = scmp.ne.s32.totalorder %s137, %s153
      %p155 = scmp.eq.s32.totalorder %s24, 0
      %p156 = por %p154, %p155
      %p157 = scmp.le.s32.totalorder 1, %s18
      %p158 = scmp.lt.s32.totalorder %s18, 9
      %p159 = pnand %p157, %p158
      %p160 = pneg %p159
      // Predicated region
      $region9: #{tpu_custom_call.1} parent=5 // pred_check
        _
      $region10: #{tpu_custom_call.1} parent=5 // pred_check_branch
        %162 = sbr.rel (%p159) target = $region12
      $region11: #{tpu_custom_call.1} parent=5 // pred_region
        %s163 = ssub.s32 %s18, 1
      $region12: #{tpu_custom_call.1} parent=5 // pred_fallthru
        _
      %p164 = scmp.lt.s32.totalorder %s18, 8
      // Predicated region
      $region13: #{tpu_custom_call.1} parent=5 // pred_check
        %p165 = pneg %p164
      $region14: #{tpu_custom_call.1} parent=5 // pred_check_branch
        %167 = sbr.rel (%p165) target = $region16
      $region15: #{tpu_custom_call.1} parent=5 // pred_region
        // Predicated region
        $region17: #{tpu_custom_call.1} parent=15 // pred_check
          %p168 = pneg %p59
        $region18: #{tpu_custom_call.1} parent=15 // pred_check_branch
          %170 = sbr.rel (%p168) target = $region20
        $region19: #{tpu_custom_call.1} parent=15 // pred_region
          %s171 = sand.u32 %s49, 1
          %s172 = scalar_lea.sflag [#allocation7], %s171
          %s173 = sand.u32 %s49, 1
          %s174 = smul.addr %s173, 16
          %s175 = scalar_lea.vmem [#allocation6], %s174
          %s176 = smul.u32 2, %s26
          %s178 = ssub.s32 256, 256
          %179 = vsyncadd %s172, %s178
          %s180 = smul.addr %s25, 4
          %s181 = sadd.s32 %s176, %s180
          %s182 = smul.addr %s181, 128
          %s183 = scalar_lea.hbm %s0, %s182
          %s184 = sshll.u32 %s175, 4
          %s185 = int_to_ptr.vmem [resolvable:$true] %s184
          %190 = dma.hbm_to_vmem [thread:$0]  %s183, 256, %s185, %s172, 128, 128, 8
        $region20: #{tpu_custom_call.1} parent=15 // pred_fallthru
          _
        // Predicated region
        $region21: #{tpu_custom_call.1} parent=15 // pred_check
          %p191 = pneg %p87
        $region22: #{tpu_custom_call.1} parent=15 // pred_check_branch
          %193 = sbr.rel (%p191) target = $region24
        $region23: #{tpu_custom_call.1} parent=15 // pred_region
          %s194 = sand.u32 %s18, 1
          %s195 = scalar_lea.sflag [#allocation10], %s194
          %s196 = sand.u32 %s77, 1
          %s197 = smul.addr %s196, 16
          %s198 = scalar_lea.vmem [#allocation9], %s197
          %s199 = smul.u32 2, %s27
          %s201 = ssub.s32 256, 256
          %202 = vsyncadd %s195, %s201
          %s203 = smul.addr %s25, 4
          %s204 = sadd.s32 %s199, %s203
          %s205 = smul.addr %s204, 128
          %s206 = scalar_lea.hbm %s1, %s205
          %s207 = sshll.u32 %s198, 4
          %s208 = int_to_ptr.vmem [resolvable:$true] %s207
          %213 = dma.hbm_to_vmem [thread:$0]  %s206, 256, %s208, %s195, 128, 128, 8
        $region24: #{tpu_custom_call.1} parent=15 // pred_fallthru
          _
        // Predicated region
        $region25: #{tpu_custom_call.1} parent=15 // pred_check
          %p214 = pneg %p115
        $region26: #{tpu_custom_call.1} parent=15 // pred_check_branch
          %216 = sbr.rel (%p214) target = $region28
        $region27: #{tpu_custom_call.1} parent=15 // pred_region
          %s217 = sand.u32 %s18, 1
          %s218 = scalar_lea.sflag [#allocation10], %s217
          %s219 = sand.u32 %s105, 1
          %s220 = smul.addr %s219, 16
          %s221 = scalar_lea.vmem [#allocation11], %s220
          %s222 = smul.u32 2, %s27
          %s224 = ssub.s32 256, 256
          %225 = vsyncadd %s218, %s224
          %s226 = smul.addr %s25, 4
          %s227 = sadd.s32 %s222, %s226
          %s228 = smul.addr %s227, 128
          %s229 = scalar_lea.hbm %s2, %s228
          %s230 = sshll.u32 %s221, 4
          %s231 = int_to_ptr.vmem [resolvable:$true] %s230
          %236 = dma.hbm_to_vmem [thread:$0]  %s229, 256, %s231, %s218, 128, 128, 8
        $region28: #{tpu_custom_call.1} parent=15 // pred_fallthru
          _
      $region16: #{tpu_custom_call.1} parent=5 // pred_fallthru
        _
      %p237 = scmp.le.s32.totalorder 1, %s18
      %p238 = scmp.lt.s32.totalorder %s18, 9
      %p239 = pnand %p237, %p238
      %p240 = pneg %p239
      // Predicated region
      $region29: #{tpu_custom_call.1} parent=5 // pred_check
        _
      $region30: #{tpu_custom_call.1} parent=5 // pred_check_branch
        %242 = sbr.rel (%p239) target = $region32
      $region31: #{tpu_custom_call.1} parent=5 // pred_region
        %s243 = ssub.s32 %s18, 1
        %s244 = sand.u32 %s52, 1
        %s245 = scalar_lea.sflag [#allocation7], %s244
        %s246 = sand.u32 %s52, 1
        %s247 = smul.addr %s246, 16
        %s248 = scalar_lea.vmem [#allocation6], %s247
        // Predicated region
        $region33: #{tpu_custom_call.1} parent=31 // pred_check
          %p249 = pneg %p65
        $region34: #{tpu_custom_call.1} parent=31 // pred_check_branch
          %251 = sbr.rel (%p249) target = $region36
        $region35: #{tpu_custom_call.1} parent=31 // pred_region
          %252 = dma.done %s245, 256
        $region36: #{tpu_custom_call.1} parent=31 // pred_fallthru
          _
        %s253 = sand.u32 %s23, 1
        %s254 = scalar_lea.sflag [#allocation10], %s253
        %s255 = sand.u32 %s80, 1
        %s256 = smul.addr %s255, 16
        %s257 = scalar_lea.vmem [#allocation9], %s256
        // Predicated region
        $region37: #{tpu_custom_call.1} parent=31 // pred_check
          %p258 = pneg %p93
        $region38: #{tpu_custom_call.1} parent=31 // pred_check_branch
          %260 = sbr.rel (%p258) target = $region40
        $region39: #{tpu_custom_call.1} parent=31 // pred_region
          %261 = dma.done %s254, 256
        $region40: #{tpu_custom_call.1} parent=31 // pred_fallthru
          _
        %s262 = sand.u32 %s23, 1
        %s263 = scalar_lea.sflag [#allocation10], %s262
        %s264 = sand.u32 %s108, 1
        %s265 = smul.addr %s264, 16
        %s266 = scalar_lea.vmem [#allocation11], %s265
        // Predicated region
        $region41: #{tpu_custom_call.1} parent=31 // pred_check
          %p267 = pneg %p121
        $region42: #{tpu_custom_call.1} parent=31 // pred_check_branch
          %269 = sbr.rel (%p267) target = $region44
        $region43: #{tpu_custom_call.1} parent=31 // pred_region
          %270 = dma.done %s263, 256
        $region44: #{tpu_custom_call.1} parent=31 // pred_fallthru
          _
        %s271 = sand.u32 %s52, 1
        %s272 = scalar_lea.sflag [#allocation7], %s271
        %s273 = sand.u32 %s52, 1
        %s274 = smul.addr %s273, 16
        %s275 = scalar_lea.vmem [#allocation6], %s274
        %p276 = pneg %p65
        %p277 = pneg %p62
        %s278 = sand.u32 %s23, 1
        %s279 = scalar_lea.sflag [#allocation10], %s278
        %s280 = sand.u32 %s80, 1
        %s281 = smul.addr %s280, 16
        %s282 = scalar_lea.vmem [#allocation9], %s281
        %p283 = pneg %p93
        %p284 = pneg %p90
        %s285 = sand.u32 %s23, 1
        %s286 = scalar_lea.sflag [#allocation10], %s285
        %s287 = sand.u32 %s108, 1
        %s288 = smul.addr %s287, 16
        %s289 = scalar_lea.vmem [#allocation11], %s288
        %p290 = pneg %p121
        %p291 = pneg %p118
        %p292 = pneg %p149
        %p293 = pneg %p146
        %s294 = sand.u32 %s136, 1
        %s295 = scalar_lea.sflag [#allocation8], %s294
        %s296 = sand.u32 %s136, 1
        %s297 = smul.addr %s296, 16
        %s298 = scalar_lea.vmem [#allocation12], %s297
        %s299 = smul.u32 2, %s29
        %s300 = smul.u32 2, %s30
        %s301 = smul.u32 2, %s30
        %s302 = smul.u32 2, %s29
        %p303 = scmp.eq.s32.totalorder %s30, 0
        // Predicated region
        $region45: #{tpu_custom_call.1} parent=31 // pred_check
          %p304 = pneg %p303
        $region46: #{tpu_custom_call.1} parent=31 // pred_check_branch
          %306 = sbr.rel (%p304) target = $region48
        $region47: #{tpu_custom_call.1} parent=31 // pred_region
          %307 = vst [vmem:[#allocation2] sm:$0xff] -inf
          %308 = vst [vmem:[#allocation2 + $0x8] sm:$0xff] -inf
          %309 = vst [vmem:[#allocation2 + $0x10] sm:$0xff] -inf
          %310 = vst [vmem:[#allocation2 + $0x18] sm:$0xff] -inf
          %311 = vst [vmem:[#allocation2 + $0x20] sm:$0xff] -inf
          %312 = vst [vmem:[#allocation2 + $0x28] sm:$0xff] -inf
          %313 = vst [vmem:[#allocation2 + $0x30] sm:$0xff] -inf
          %314 = vst [vmem:[#allocation2 + $0x38] sm:$0xff] -inf
          %315 = vst [vmem:[#allocation3] sm:$0xff] 0.0
          %316 = vst [vmem:[#allocation3 + $0x8] sm:$0xff] 0.0
          %317 = vst [vmem:[#allocation3 + $0x10] sm:$0xff] 0.0
          %318 = vst [vmem:[#allocation3 + $0x18] sm:$0xff] 0.0
          %319 = vst [vmem:[#allocation3 + $0x20] sm:$0xff] 0.0
          %320 = vst [vmem:[#allocation3 + $0x28] sm:$0xff] 0.0
          %321 = vst [vmem:[#allocation3 + $0x30] sm:$0xff] 0.0
          %322 = vst [vmem:[#allocation3 + $0x38] sm:$0xff] 0.0
          %vm323 = vcmask 261120
          %324 = vst.msk [vmem:[#allocation4] sm:$0xff] %vm323, 0.0
          %325 = vst.msk [vmem:[#allocation4 + $0x8] sm:$0xff] %vm323, 0.0
          %326 = vst.msk [vmem:[#allocation4 + $0x10] sm:$0xff] %vm323, 0.0
          %327 = vst.msk [vmem:[#allocation4 + $0x18] sm:$0xff] %vm323, 0.0
          %328 = vst.msk [vmem:[#allocation4 + $0x20] sm:$0xff] %vm323, 0.0
          %329 = vst.msk [vmem:[#allocation4 + $0x28] sm:$0xff] %vm323, 0.0
          %330 = vst.msk [vmem:[#allocation4 + $0x30] sm:$0xff] %vm323, 0.0
          %331 = vst.msk [vmem:[#allocation4 + $0x38] sm:$0xff] %vm323, 0.0
          %v332 = vld [vmem:[%s248] sm:$0xff]
          %v333 = vld [vmem:[%s248 + $0x8] sm:$0xff]
          %v334 = vmul.f32 %v332, 0.17677669
          %v335 = vmul.f32 %v333, 0.17677669
          %336 = vst [vmem:[#allocation5] sm:$0xff] %v334
          %337 = vst [vmem:[#allocation5 + $0x8] sm:$0xff] %v335
        $region48: #{tpu_custom_call.1} parent=31 // pred_fallthru
          _
        %v338 = vld [vmem:[#allocation5] sm:$0xff]
        %v339 = vld [vmem:[#allocation5 + $0x8] sm:$0xff]
        %v340 = vld [vmem:[%s257] sm:$0xff]
        %v341 = vld [vmem:[%s257 + $0x8] sm:$0xff]
        %v342 = vld [vmem:[%s266] sm:$0xff]
        %v343 = vld [vmem:[%s266 + $0x8] sm:$0xff]
        %vm344 = vcmask 261120
        %v346 = vsel %vm344, %v338, 0
        %v349 = vsel %vm344, %v339, 0
        %v352 = vsel %vm344, %v340, 0
        %v355 = vsel %vm344, %v341, 0
        %357 = vmatprep.subr.mxu0 0.0
        %358 = vmatpush1.xpose.msra.mxu0 %v352
        %359 = vmatprep.subr.mxu0 0.0
        %360 = vmatpush1.xpose.msra.mxu0 %v355
        %361 = vmatprep.subr.mxu0 0.0
        %362 = vmatpush1.xpose.msra.mxu0 0.0
        %363 = vmatprep.subr.mxu0 0.0
        %364 = vmatpush1.xpose.msra.mxu0 0.0
        %365 = vmatprep.subr.mxu0 0.0
        %366 = vmatpush1.xpose.msra.mxu0 0.0
        %367 = vmatprep.subr.mxu0 0.0
        %368 = vmatpush1.xpose.msra.mxu0 0.0
        %369 = vmatprep.subr.mxu0 0.0
        %370 = vmatpush1.xpose.msra.mxu0 0.0
        %371 = vmatprep.subr.mxu0 0.0
        %372 = vmatpush1.xpose.msra.mxu0 0.0
        %373 = vmatprep.subr.mxu0 0.0
        %374 = vmatpush1.xpose.msra.mxu0 0.0
        %375 = vmatprep.subr.mxu0 0.0
        %376 = vmatpush1.xpose.msra.mxu0 0.0
        %377 = vmatprep.subr.mxu0 0.0
        %378 = vmatpush1.xpose.msra.mxu0 0.0
        %379 = vmatprep.subr.mxu0 0.0
        %380 = vmatpush1.xpose.msra.mxu0 0.0
        %381 = vmatprep.subr.mxu0 0.0
        %382 = vmatpush1.xpose.msra.mxu0 0.0
        %383 = vmatprep.subr.mxu0 0.0
        %384 = vmatpush1.xpose.msra.mxu0 0.0
        %385 = vmatprep.subr.mxu0 0.0
        %386 = vmatpush1.xpose.msra.mxu0 0.0
        %387 = vmatprep.subr.mxu0 0.0
        %388 = vmatpush1.xpose.msra.mxu0 0.0
        %389 = vmatprep.subr.mxu0 0.0
        %390 = vmatpush1.xpose.msra.mxu0 0.0
        %391 = vmatprep.subr.mxu0 0.0
        %392 = vmatpush1.xpose.msra.mxu0 0.0
        %393 = vmatprep.subr.mxu0 0.0
        %394 = vmatpush1.xpose.msra.mxu0 0.0
        %395 = vmatprep.subr.mxu0 0.0
        %396 = vmatpush1.xpose.msra.mxu0 0.0
        %397 = vmatprep.subr.mxu0 0.0
        %398 = vmatpush1.xpose.msra.mxu0 0.0
        %399 = vmatprep.subr.mxu0 0.0
        %400 = vmatpush1.xpose.msra.mxu0 0.0
        %401 = vmatprep.subr.mxu0 0.0
        %402 = vmatpush1.xpose.msra.mxu0 0.0
        %403 = vmatprep.subr.mxu0 0.0
        %404 = vmatpush1.xpose.msra.mxu0 0.0
        %405 = vmatprep.subr.mxu0 0.0
        %406 = vmatpush1.xpose.msra.mxu0 0.0
        %407 = vmatprep.subr.mxu0 0.0
        %408 = vmatpush1.xpose.msra.mxu0 0.0
        %409 = vmatprep.subr.mxu0 0.0
        %410 = vmatpush1.xpose.msra.mxu0 0.0
        %411 = vmatprep.subr.mxu0 0.0
        %412 = vmatpush1.xpose.msra.mxu0 0.0
        %413 = vmatprep.subr.mxu0 0.0
        %414 = vmatpush1.xpose.msra.mxu0 0.0
        %415 = vmatprep.subr.mxu0 0.0
        %416 = vmatpush1.xpose.msra.mxu0 0.0
        %417 = vmatprep.subr.mxu0 0.0
        %418 = vmatpush1.xpose.msra.mxu0 0.0
        %419 = vmatprep.subr.mxu0 0.0
        %420 = vmatpush1.xpose.msra.mxu0 0.0
        %421 = vmatprep.mubr.f32.mxu0 0.0
        %422 = vmatmul.mubr.f32.gmra.mrb[0].mxu0 %v346
        %v423 = vpop.f32.mrb[0].mxu0
        %v424 = vadd.f32 0.0, %v423
        %v425 = vpop.f32.mrb[0].mxu0
        %426 = vmatprep.mubr.f32.mxu0 0.0
        %427 = vmatmul.mubr.f32.gmra.mrb[0].mxu0 %v349
        %v428 = vpop.f32.mrb[0].mxu0
        %v429 = vadd.f32 0.0, %v428
        %v430 = vpop.f32.mrb[0].mxu0
        %431 = vdwg.mxu0
        %v432 = vld [vmem:[#allocation2] sm:$0xff]
        %v433 = vld [vmem:[#allocation2 + $0x8] sm:$0xff]
        %v434 = vld [vmem:[#allocation3] sm:$0xff]
        %v435 = vld [vmem:[#allocation3 + $0x8] sm:$0xff]
        %vm436 = vcmask 130048
        %v437 = vsel %vm436, %v424, -inf
        %438 = vmax.xlane.f32.xlu0 %v437
        %v439 = vpop.xlane.xlu0 %438
        %v440 = vsel %vm436, %v429, -inf
        %441 = vmax.xlane.f32.xlu0 %v440
        %v442 = vpop.xlane.xlu0 %441
        %v443 = vmax.f32 %v432, %v439
        %v444 = vmax.f32 %v433, %v442
        %v445 = vsub.f32 %v432, %v443
        %v446 = vsub.f32 %v433, %v444
        %v447 = vmul.f32 %v445, 1.442695
        %v448 = vpow.pop %v447
        %v449 = vmul.f32 %v446, 1.442695
        %v450 = vpow.pop %v449
        %452 = vset.pattern.permute.xlu0 0
        %453 = vperm.xlu0 %452, %v443
        %v454 = vpop.permute.xlu0 %453
        %457 = vset.pattern.permute.xlu0 0
        %458 = vperm.xlu0 %457, %v444
        %v459 = vpop.permute.xlu0 %458
        %v461 = vsub.f32 %v424, %v454
        %v462 = vsub.f32 %v429, %v459
        %v463 = vmul.f32 %v461, 1.442695
        %v464 = vpow.pop %v463
        %v465 = vmul.f32 %v462, 1.442695
        %v466 = vpow.pop %v465
        %v467 = vsel %vm436, %v464, 0.0
        %468 = vadd.xlane.f32.xlu0 %v467
        %v469 = vpop.xlane.xlu0 %468
        %v470 = vsel %vm436, %v466, 0.0
        %471 = vadd.xlane.f32.xlu0 %v470
        %v472 = vpop.xlane.xlu0 %471
        %474 = vset.pattern.permute.xlu0 0
        %475 = vperm.xlu0 %474, %v448
        %v476 = vpop.permute.xlu0 %475
        %479 = vset.pattern.permute.xlu0 0
        %480 = vperm.xlu0 %479, %v450
        %v481 = vpop.permute.xlu0 %480
        %v483 = vmul.f32 %v476, %v434
        %v484 = vmul.f32 %v481, %v435
        %v485 = vadd.f32 %v483, %v469
        %v486 = vadd.f32 %v484, %v472
        %487 = vst [vmem:[#allocation3] sm:$0xff] %v485
        %488 = vst [vmem:[#allocation3 + $0x8] sm:$0xff] %v486
        %v489 = vld [vmem:[#allocation4] sm:$0xff]
        %v490 = vld [vmem:[#allocation4 + $0x8] sm:$0xff]
        %v491 = vmul.f32 %v476, %v489
        %v492 = vmul.f32 %v481, %v490
        %v494 = vsel %vm436, %v464, 0
        %v497 = vsel %vm436, %v466, 0
        %499 = vmatprep.subr.mxu0 0.0
        %500 = vmatpush1.msra.mxu0 %v342
        %501 = vmatprep.subr.mxu0 0.0
        %502 = vmatpush1.msra.mxu0 %v343
        %503 = vmatprep.subr.mxu0 0.0
        %504 = vmatpush1.msra.mxu0 0.0
        %505 = vmatprep.subr.mxu0 0.0
        %506 = vmatpush1.msra.mxu0 0.0
        %507 = vmatprep.subr.mxu0 0.0
        %508 = vmatpush1.msra.mxu0 0.0
        %509 = vmatprep.subr.mxu0 0.0
        %510 = vmatpush1.msra.mxu0 0.0
        %511 = vmatprep.subr.mxu0 0.0
        %512 = vmatpush1.msra.mxu0 0.0
        %513 = vmatprep.subr.mxu0 0.0
        %514 = vmatpush1.msra.mxu0 0.0
        %515 = vmatprep.subr.mxu0 0.0
        %516 = vmatpush1.msra.mxu0 0.0
        %517 = vmatprep.subr.mxu0 0.0
        %518 = vmatpush1.msra.mxu0 0.0
        %519 = vmatprep.subr.mxu0 0.0
        %520 = vmatpush1.msra.mxu0 0.0
        %521 = vmatprep.subr.mxu0 0.0
        %522 = vmatpush1.msra.mxu0 0.0
        %523 = vmatprep.subr.mxu0 0.0
        %524 = vmatpush1.msra.mxu0 0.0
        %525 = vmatprep.subr.mxu0 0.0
        %526 = vmatpush1.msra.mxu0 0.0
        %527 = vmatprep.subr.mxu0 0.0
        %528 = vmatpush1.msra.mxu0 0.0
        %529 = vmatprep.subr.mxu0 0.0
        %530 = vmatpush1.msra.mxu0 0.0
        %531 = vmatprep.subr.mxu0 0.0
        %532 = vmatpush1.msra.mxu0 0.0
        %533 = vmatprep.subr.mxu0 0.0
        %534 = vmatpush1.msra.mxu0 0.0
        %535 = vmatprep.subr.mxu0 0.0
        %536 = vmatpush1.msra.mxu0 0.0
        %537 = vmatprep.subr.mxu0 0.0
        %538 = vmatpush1.msra.mxu0 0.0
        %539 = vmatprep.subr.mxu0 0.0
        %540 = vmatpush1.msra.mxu0 0.0
        %541 = vmatprep.subr.mxu0 0.0
        %542 = vmatpush1.msra.mxu0 0.0
        %543 = vmatprep.subr.mxu0 0.0
        %544 = vmatpush1.msra.mxu0 0.0
        %545 = vmatprep.subr.mxu0 0.0
        %546 = vmatpush1.msra.mxu0 0.0
        %547 = vmatprep.subr.mxu0 0.0
        %548 = vmatpush1.msra.mxu0 0.0
        %549 = vmatprep.subr.mxu0 0.0
        %550 = vmatpush1.msra.mxu0 0.0
        %551 = vmatprep.subr.mxu0 0.0
        %552 = vmatpush1.msra.mxu0 0.0
        %553 = vmatprep.subr.mxu0 0.0
        %554 = vmatpush1.msra.mxu0 0.0
        %555 = vmatprep.subr.mxu0 0.0
        %556 = vmatpush1.msra.mxu0 0.0
        %557 = vmatprep.subr.mxu0 0.0
        %558 = vmatpush1.msra.mxu0 0.0
        %559 = vmatprep.subr.mxu0 0.0
        %560 = vmatpush1.msra.mxu0 0.0
        %561 = vmatprep.subr.mxu0 0.0
        %562 = vmatpush1.msra.mxu0 0.0
        %563 = vmatprep.mubr.f32.mxu0 0.0
        %564 = vmatmul.mubr.f32.gmra.mrb[0].mxu0 %v494
        %v565 = vpop.f32.mrb[0].mxu0
        %v566 = vadd.f32 0.0, %v565
        %v567 = vpop.f32.mrb[0].mxu0
        %568 = vmatprep.mubr.f32.mxu0 0.0
        %569 = vmatmul.mubr.f32.gmra.mrb[0].mxu0 %v497
        %v570 = vpop.f32.mrb[0].mxu0
        %v571 = vadd.f32 0.0, %v570
        %v572 = vpop.f32.mrb[0].mxu0
        %573 = vdwg.mxu0
        %v574 = vadd.f32 %v491, %v566
        %v575 = vadd.f32 %v492, %v571
        %576 = vst.msk [vmem:[#allocation4] sm:$0xff] %vm344, %v574
        %577 = vst.msk [vmem:[#allocation4 + $0x8] sm:$0xff] %vm344, %v575
        %578 = vst [vmem:[#allocation2] sm:$0xff] %v443
        %579 = vst [vmem:[#allocation2 + $0x8] sm:$0xff] %v444
        %v580 = vld [vmem:[#allocation5] sm:$0xff]
        %v581 = vld [vmem:[#allocation5 + $0x8] sm:$0xff]
        %v582 = vld [vmem:[%s257] sm:$0xff]
        %v583 = vld [vmem:[%s257 + $0x8] sm:$0xff]
        %v584 = vld [vmem:[%s266] sm:$0xff]
        %v585 = vld [vmem:[%s266 + $0x8] sm:$0xff]
        %588 = vrot.lane.b32.xlu0 %v580, 96
        %v589 = vpop.permute.xlu0 %588
        %590 = vrot.lane.b32.xlu0 %v581, 96
        %v591 = vpop.permute.xlu0 %590
        %594 = vrot.lane.b32.xlu0 %v582, 96
        %v595 = vpop.permute.xlu0 %594
        %596 = vrot.lane.b32.xlu0 %v583, 96
        %v597 = vpop.permute.xlu0 %596
        %v598 = vsel %vm344, %v589, 0
        %v600 = vsel %vm344, %v591, 0
        %v602 = vsel %vm344, %v595, 0
        %v604 = vsel %vm344, %v597, 0
        %606 = vmatprep.subr.mxu0 0.0
        %607 = vmatpush1.xpose.msra.mxu0 %v602
        %608 = vmatprep.subr.mxu0 0.0
        %609 = vmatpush1.xpose.msra.mxu0 %v604
        %610 = vmatprep.subr.mxu0 0.0
        %611 = vmatpush1.xpose.msra.mxu0 0.0
        %612 = vmatprep.subr.mxu0 0.0
        %613 = vmatpush1.xpose.msra.mxu0 0.0
        %614 = vmatprep.subr.mxu0 0.0
        %615 = vmatpush1.xpose.msra.mxu0 0.0
        %616 = vmatprep.subr.mxu0 0.0
        %617 = vmatpush1.xpose.msra.mxu0 0.0
        %618 = vmatprep.subr.mxu0 0.0
        %619 = vmatpush1.xpose.msra.mxu0 0.0
        %620 = vmatprep.subr.mxu0 0.0
        %621 = vmatpush1.xpose.msra.mxu0 0.0
        %622 = vmatprep.subr.mxu0 0.0
        %623 = vmatpush1.xpose.msra.mxu0 0.0
        %624 = vmatprep.subr.mxu0 0.0
        %625 = vmatpush1.xpose.msra.mxu0 0.0
        %626 = vmatprep.subr.mxu0 0.0
        %627 = vmatpush1.xpose.msra.mxu0 0.0
        %628 = vmatprep.subr.mxu0 0.0
        %629 = vmatpush1.xpose.msra.mxu0 0.0
        %630 = vmatprep.subr.mxu0 0.0
        %631 = vmatpush1.xpose.msra.mxu0 0.0
        %632 = vmatprep.subr.mxu0 0.0
        %633 = vmatpush1.xpose.msra.mxu0 0.0
        %634 = vmatprep.subr.mxu0 0.0
        %635 = vmatpush1.xpose.msra.mxu0 0.0
        %636 = vmatprep.subr.mxu0 0.0
        %637 = vmatpush1.xpose.msra.mxu0 0.0
        %638 = vmatprep.subr.mxu0 0.0
        %639 = vmatpush1.xpose.msra.mxu0 0.0
        %640 = vmatprep.subr.mxu0 0.0
        %641 = vmatpush1.xpose.msra.mxu0 0.0
        %642 = vmatprep.subr.mxu0 0.0
        %643 = vmatpush1.xpose.msra.mxu0 0.0
        %644 = vmatprep.subr.mxu0 0.0
        %645 = vmatpush1.xpose.msra.mxu0 0.0
        %646 = vmatprep.subr.mxu0 0.0
        %647 = vmatpush1.xpose.msra.mxu0 0.0
        %648 = vmatprep.subr.mxu0 0.0
        %649 = vmatpush1.xpose.msra.mxu0 0.0
        %650 = vmatprep.subr.mxu0 0.0
        %651 = vmatpush1.xpose.msra.mxu0 0.0
        %652 = vmatprep.subr.mxu0 0.0
        %653 = vmatpush1.xpose.msra.mxu0 0.0
        %654 = vmatprep.subr.mxu0 0.0
        %655 = vmatpush1.xpose.msra.mxu0 0.0
        %656 = vmatprep.subr.mxu0 0.0
        %657 = vmatpush1.xpose.msra.mxu0 0.0
        %658 = vmatprep.subr.mxu0 0.0
        %659 = vmatpush1.xpose.msra.mxu0 0.0
        %660 = vmatprep.subr.mxu0 0.0
        %661 = vmatpush1.xpose.msra.mxu0 0.0
        %662 = vmatprep.subr.mxu0 0.0
        %663 = vmatpush1.xpose.msra.mxu0 0.0
        %664 = vmatprep.subr.mxu0 0.0
        %665 = vmatpush1.xpose.msra.mxu0 0.0
        %666 = vmatprep.subr.mxu0 0.0
        %667 = vmatpush1.xpose.msra.mxu0 0.0
        %668 = vmatprep.subr.mxu0 0.0
        %669 = vmatpush1.xpose.msra.mxu0 0.0
        %670 = vmatprep.mubr.f32.mxu0 0.0
        %671 = vmatmul.mubr.f32.gmra.mrb[0].mxu0 %v598
        %v672 = vpop.f32.mrb[0].mxu0
        %v673 = vadd.f32 0.0, %v672
        %v674 = vpop.f32.mrb[0].mxu0
        %675 = vmatprep.mubr.f32.mxu0 0.0
        %676 = vmatmul.mubr.f32.gmra.mrb[0].mxu0 %v600
        %v677 = vpop.f32.mrb[0].mxu0
        %v678 = vadd.f32 0.0, %v677
        %v679 = vpop.f32.mrb[0].mxu0
        %680 = vdwg.mxu0
        %s681 = scalar_lea.vmem [#allocation2], 16
        %v682 = vld [vmem:[%s681] sm:$0xff]
        %v683 = vld [vmem:[%s681 + $0x8] sm:$0xff]
        %s684 = scalar_lea.vmem [#allocation3], 16
        %v685 = vld [vmem:[%s684] sm:$0xff]
        %v686 = vld [vmem:[%s684 + $0x8] sm:$0xff]
        %v687 = vsel %vm436, %v673, -inf
        %688 = vmax.xlane.f32.xlu0 %v687
        %v689 = vpop.xlane.xlu0 %688
        %v690 = vsel %vm436, %v678, -inf
        %691 = vmax.xlane.f32.xlu0 %v690
        %v692 = vpop.xlane.xlu0 %691
        %v693 = vmax.f32 %v682, %v689
        %v694 = vmax.f32 %v683, %v692
        %v695 = vsub.f32 %v682, %v693
        %v696 = vsub.f32 %v683, %v694
        %v697 = vmul.f32 %v695, 1.442695
        %v698 = vpow.pop %v697
        %v699 = vmul.f32 %v696, 1.442695
        %v700 = vpow.pop %v699
        %702 = vset.pattern.permute.xlu0 0
        %703 = vperm.xlu0 %702, %v693
        %v704 = vpop.permute.xlu0 %703
        %707 = vset.pattern.permute.xlu0 0
        %708 = vperm.xlu0 %707, %v694
        %v709 = vpop.permute.xlu0 %708
        %v711 = vsub.f32 %v673, %v704
        %v712 = vsub.f32 %v678, %v709
        %v713 = vmul.f32 %v711, 1.442695
        %v714 = vpow.pop %v713
        %v715 = vmul.f32 %v712, 1.442695
        %v716 = vpow.pop %v715
        %v717 = vsel %vm436, %v714, 0.0
        %718 = vadd.xlane.f32.xlu0 %v717
        %v719 = vpop.xlane.xlu0 %718
        %v720 = vsel %vm436, %v716, 0.0
        %721 = vadd.xlane.f32.xlu0 %v720
        %v722 = vpop.xlane.xlu0 %721
        %724 = vset.pattern.permute.xlu0 0
        %725 = vperm.xlu0 %724, %v698
        %v726 = vpop.permute.xlu0 %725
        %729 = vset.pattern.permute.xlu0 0
        %730 = vperm.xlu0 %729, %v700
        %v731 = vpop.permute.xlu0 %730
        %v733 = vmul.f32 %v726, %v685
        %v734 = vmul.f32 %v731, %v686
        %v735 = vadd.f32 %v733, %v719
        %v736 = vadd.f32 %v734, %v722
        %737 = vst [vmem:[%s684] sm:$0xff] %v735
        %738 = vst [vmem:[%s684 + $0x8] sm:$0xff] %v736
        %s739 = scalar_lea.vmem [#allocation4], 16
        %v740 = vld [vmem:[%s739] sm:$0xff]
        %v741 = vld [vmem:[%s739 + $0x8] sm:$0xff]
        %v742 = vmul.f32 %v726, %v740
        %v743 = vmul.f32 %v731, %v741
        %746 = vrot.lane.b32.xlu0 %v584, 96
        %v747 = vpop.permute.xlu0 %746
        %748 = vrot.lane.b32.xlu0 %v585, 96
        %v749 = vpop.permute.xlu0 %748
        %v753 = vsel %vm436, %v714, 0
        %v756 = vsel %vm436, %v716, 0
        %758 = vmatprep.subr.mxu0 0.0
        %759 = vmatpush1.msra.mxu0 %v747
        %760 = vmatprep.subr.mxu0 0.0
        %761 = vmatpush1.msra.mxu0 %v749
        %762 = vmatprep.subr.mxu0 0.0
        %763 = vmatpush1.msra.mxu0 0.0
        %764 = vmatprep.subr.mxu0 0.0
        %765 = vmatpush1.msra.mxu0 0.0
        %766 = vmatprep.subr.mxu0 0.0
        %767 = vmatpush1.msra.mxu0 0.0
        %768 = vmatprep.subr.mxu0 0.0
        %769 = vmatpush1.msra.mxu0 0.0
        %770 = vmatprep.subr.mxu0 0.0
        %771 = vmatpush1.msra.mxu0 0.0
        %772 = vmatprep.subr.mxu0 0.0
        %773 = vmatpush1.msra.mxu0 0.0
        %774 = vmatprep.subr.mxu0 0.0
        %775 = vmatpush1.msra.mxu0 0.0
        %776 = vmatprep.subr.mxu0 0.0
        %777 = vmatpush1.msra.mxu0 0.0
        %778 = vmatprep.subr.mxu0 0.0
        %779 = vmatpush1.msra.mxu0 0.0
        %780 = vmatprep.subr.mxu0 0.0
        %781 = vmatpush1.msra.mxu0 0.0
        %782 = vmatprep.subr.mxu0 0.0
        %783 = vmatpush1.msra.mxu0 0.0
        %784 = vmatprep.subr.mxu0 0.0
        %785 = vmatpush1.msra.mxu0 0.0
        %786 = vmatprep.subr.mxu0 0.0
        %787 = vmatpush1.msra.mxu0 0.0
        %788 = vmatprep.subr.mxu0 0.0
        %789 = vmatpush1.msra.mxu0 0.0
        %790 = vmatprep.subr.mxu0 0.0
        %791 = vmatpush1.msra.mxu0 0.0
        %792 = vmatprep.subr.mxu0 0.0
        %793 = vmatpush1.msra.mxu0 0.0
        %794 = vmatprep.subr.mxu0 0.0
        %795 = vmatpush1.msra.mxu0 0.0
        %796 = vmatprep.subr.mxu0 0.0
        %797 = vmatpush1.msra.mxu0 0.0
        %798 = vmatprep.subr.mxu0 0.0
        %799 = vmatpush1.msra.mxu0 0.0
        %800 = vmatprep.subr.mxu0 0.0
        %801 = vmatpush1.msra.mxu0 0.0
        %802 = vmatprep.subr.mxu0 0.0
        %803 = vmatpush1.msra.mxu0 0.0
        %804 = vmatprep.subr.mxu0 0.0
        %805 = vmatpush1.msra.mxu0 0.0
        %806 = vmatprep.subr.mxu0 0.0
        %807 = vmatpush1.msra.mxu0 0.0
        %808 = vmatprep.subr.mxu0 0.0
        %809 = vmatpush1.msra.mxu0 0.0
        %810 = vmatprep.subr.mxu0 0.0
        %811 = vmatpush1.msra.mxu0 0.0
        %812 = vmatprep.subr.mxu0 0.0
        %813 = vmatpush1.msra.mxu0 0.0
        %814 = vmatprep.subr.mxu0 0.0
        %815 = vmatpush1.msra.mxu0 0.0
        %816 = vmatprep.subr.mxu0 0.0
        %817 = vmatpush1.msra.mxu0 0.0
        %818 = vmatprep.subr.mxu0 0.0
        %819 = vmatpush1.msra.mxu0 0.0
        %820 = vmatprep.subr.mxu0 0.0
        %821 = vmatpush1.msra.mxu0 0.0
        %822 = vmatprep.mubr.f32.mxu0 0.0
        %823 = vmatmul.mubr.f32.gmra.mrb[0].mxu0 %v753
        %v824 = vpop.f32.mrb[0].mxu0
        %v825 = vadd.f32 0.0, %v824
        %v826 = vpop.f32.mrb[0].mxu0
        %827 = vmatprep.mubr.f32.mxu0 0.0
        %828 = vmatmul.mubr.f32.gmra.mrb[0].mxu0 %v756
        %v829 = vpop.f32.mrb[0].mxu0
        %v830 = vadd.f32 0.0, %v829
        %v831 = vpop.f32.mrb[0].mxu0
        %832 = vdwg.mxu0
        %v833 = vadd.f32 %v742, %v825
        %v834 = vadd.f32 %v743, %v830
        %835 = vst.msk [vmem:[%s739] sm:$0xff] %vm344, %v833
        %836 = vst.msk [vmem:[%s739 + $0x8] sm:$0xff] %vm344, %v834
        %837 = vst [vmem:[%s681] sm:$0xff] %v693
        %838 = vst [vmem:[%s681 + $0x8] sm:$0xff] %v694
        %v839 = vld [vmem:[#allocation5] sm:$0xff]
        %v840 = vld [vmem:[#allocation5 + $0x8] sm:$0xff]
        %v841 = vld [vmem:[%s257] sm:$0xff]
        %v842 = vld [vmem:[%s257 + $0x8] sm:$0xff]
        %v843 = vld [vmem:[%s266] sm:$0xff]
        %v844 = vld [vmem:[%s266 + $0x8] sm:$0xff]
        %847 = vrot.lane.b32.xlu0 %v839, 64
        %v848 = vpop.permute.xlu0 %847
        %849 = vrot.lane.b32.xlu0 %v840, 64
        %v850 = vpop.permute.xlu0 %849
        %853 = vrot.lane.b32.xlu0 %v841, 64
        %v854 = vpop.permute.xlu0 %853
        %855 = vrot.lane.b32.xlu0 %v842, 64
        %v856 = vpop.permute.xlu0 %855
        %v857 = vsel %vm344, %v848, 0
        %v859 = vsel %vm344, %v850, 0
        %v861 = vsel %vm344, %v854, 0
        %v863 = vsel %vm344, %v856, 0
        %865 = vmatprep.subr.mxu0 0.0
        %866 = vmatpush1.xpose.msra.mxu0 %v861
        %867 = vmatprep.subr.mxu0 0.0
        %868 = vmatpush1.xpose.msra.mxu0 %v863
        %869 = vmatprep.subr.mxu0 0.0
        %870 = vmatpush1.xpose.msra.mxu0 0.0
        %871 = vmatprep.subr.mxu0 0.0
        %872 = vmatpush1.xpose.msra.mxu0 0.0
        %873 = vmatprep.subr.mxu0 0.0
        %874 = vmatpush1.xpose.msra.mxu0 0.0
        %875 = vmatprep.subr.mxu0 0.0
        %876 = vmatpush1.xpose.msra.mxu0 0.0
        %877 = vmatprep.subr.mxu0 0.0
        %878 = vmatpush1.xpose.msra.mxu0 0.0
        %879 = vmatprep.subr.mxu0 0.0
        %880 = vmatpush1.xpose.msra.mxu0 0.0
        %881 = vmatprep.subr.mxu0 0.0
        %882 = vmatpush1.xpose.msra.mxu0 0.0
        %883 = vmatprep.subr.mxu0 0.0
        %884 = vmatpush1.xpose.msra.mxu0 0.0
        %885 = vmatprep.subr.mxu0 0.0
        %886 = vmatpush1.xpose.msra.mxu0 0.0
        %887 = vmatprep.subr.mxu0 0.0
        %888 = vmatpush1.xpose.msra.mxu0 0.0
        %889 = vmatprep.subr.mxu0 0.0
        %890 = vmatpush1.xpose.msra.mxu0 0.0
        %891 = vmatprep.subr.mxu0 0.0
        %892 = vmatpush1.xpose.msra.mxu0 0.0
        %893 = vmatprep.subr.mxu0 0.0
        %894 = vmatpush1.xpose.msra.mxu0 0.0
        %895 = vmatprep.subr.mxu0 0.0
        %896 = vmatpush1.xpose.msra.mxu0 0.0
        %897 = vmatprep.subr.mxu0 0.0
        %898 = vmatpush1.xpose.msra.mxu0 0.0
        %899 = vmatprep.subr.mxu0 0.0
        %900 = vmatpush1.xpose.msra.mxu0 0.0
        %901 = vmatprep.subr.mxu0 0.0
        %902 = vmatpush1.xpose.msra.mxu0 0.0
        %903 = vmatprep.subr.mxu0 0.0
        %904 = vmatpush1.xpose.msra.mxu0 0.0
        %905 = vmatprep.subr.mxu0 0.0
        %906 = vmatpush1.xpose.msra.mxu0 0.0
        %907 = vmatprep.subr.mxu0 0.0
        %908 = vmatpush1.xpose.msra.mxu0 0.0
        %909 = vmatprep.subr.mxu0 0.0
        %910 = vmatpush1.xpose.msra.mxu0 0.0
        %911 = vmatprep.subr.mxu0 0.0
        %912 = vmatpush1.xpose.msra.mxu0 0.0
        %913 = vmatprep.subr.mxu0 0.0
        %914 = vmatpush1.xpose.msra.mxu0 0.0
        %915 = vmatprep.subr.mxu0 0.0
        %916 = vmatpush1.xpose.msra.mxu0 0.0
        %917 = vmatprep.subr.mxu0 0.0
        %918 = vmatpush1.xpose.msra.mxu0 0.0
        %919 = vmatprep.subr.mxu0 0.0
        %920 = vmatpush1.xpose.msra.mxu0 0.0
        %921 = vmatprep.subr.mxu0 0.0
        %922 = vmatpush1.xpose.msra.mxu0 0.0
        %923 = vmatprep.subr.mxu0 0.0
        %924 = vmatpush1.xpose.msra.mxu0 0.0
        %925 = vmatprep.subr.mxu0 0.0
        %926 = vmatpush1.xpose.msra.mxu0 0.0
        %927 = vmatprep.subr.mxu0 0.0
        %928 = vmatpush1.xpose.msra.mxu0 0.0
        %929 = vmatprep.mubr.f32.mxu0 0.0
        %930 = vmatmul.mubr.f32.gmra.mrb[0].mxu0 %v857
        %v931 = vpop.f32.mrb[0].mxu0
        %v932 = vadd.f32 0.0, %v931
        %v933 = vpop.f32.mrb[0].mxu0
        %934 = vmatprep.mubr.f32.mxu0 0.0
        %935 = vmatmul.mubr.f32.gmra.mrb[0].mxu0 %v859
        %v936 = vpop.f32.mrb[0].mxu0
        %v937 = vadd.f32 0.0, %v936
        %v938 = vpop.f32.mrb[0].mxu0
        %939 = vdwg.mxu0
        %s940 = scalar_lea.vmem [#allocation2], 32
        %v941 = vld [vmem:[%s940] sm:$0xff]
        %v942 = vld [vmem:[%s940 + $0x8] sm:$0xff]
        %s943 = scalar_lea.vmem [#allocation3], 32
        %v944 = vld [vmem:[%s943] sm:$0xff]
        %v945 = vld [vmem:[%s943 + $0x8] sm:$0xff]
        %v946 = vsel %vm436, %v932, -inf
        %947 = vmax.xlane.f32.xlu0 %v946
        %v948 = vpop.xlane.xlu0 %947
        %v949 = vsel %vm436, %v937, -inf
        %950 = vmax.xlane.f32.xlu0 %v949
        %v951 = vpop.xlane.xlu0 %950
        %v952 = vmax.f32 %v941, %v948
        %v953 = vmax.f32 %v942, %v951
        %v954 = vsub.f32 %v941, %v952
        %v955 = vsub.f32 %v942, %v953
        %v956 = vmul.f32 %v954, 1.442695
        %v957 = vpow.pop %v956
        %v958 = vmul.f32 %v955, 1.442695
        %v959 = vpow.pop %v958
        %961 = vset.pattern.permute.xlu0 0
        %962 = vperm.xlu0 %961, %v952
        %v963 = vpop.permute.xlu0 %962
        %966 = vset.pattern.permute.xlu0 0
        %967 = vperm.xlu0 %966, %v953
        %v968 = vpop.permute.xlu0 %967
        %v970 = vsub.f32 %v932, %v963
        %v971 = vsub.f32 %v937, %v968
        %v972 = vmul.f32 %v970, 1.442695
        %v973 = vpow.pop %v972
        %v974 = vmul.f32 %v971, 1.442695
        %v975 = vpow.pop %v974
        %v976 = vsel %vm436, %v973, 0.0
        %977 = vadd.xlane.f32.xlu0 %v976
        %v978 = vpop.xlane.xlu0 %977
        %v979 = vsel %vm436, %v975, 0.0
        %980 = vadd.xlane.f32.xlu0 %v979
        %v981 = vpop.xlane.xlu0 %980
        %983 = vset.pattern.permute.xlu0 0
        %984 = vperm.xlu0 %983, %v957
        %v985 = vpop.permute.xlu0 %984
        %988 = vset.pattern.permute.xlu0 0
        %989 = vperm.xlu0 %988, %v959
        %v990 = vpop.permute.xlu0 %989
        %v992 = vmul.f32 %v985, %v944
        %v993 = vmul.f32 %v990, %v945
        %v994 = vadd.f32 %v992, %v978
        %v995 = vadd.f32 %v993, %v981
        %996 = vst [vmem:[%s943] sm:$0xff] %v994
        %997 = vst [vmem:[%s943 + $0x8] sm:$0xff] %v995
        %s998 = scalar_lea.vmem [#allocation4], 32
        %v999 = vld [vmem:[%s998] sm:$0xff]
        %v1000 = vld [vmem:[%s998 + $0x8] sm:$0xff]
        %v1001 = vmul.f32 %v985, %v999
        %v1002 = vmul.f32 %v990, %v1000
        %1005 = vrot.lane.b32.xlu0 %v843, 64
        %v1006 = vpop.permute.xlu0 %1005
        %1007 = vrot.lane.b32.xlu0 %v844, 64
        %v1008 = vpop.permute.xlu0 %1007
        %v1012 = vsel %vm436, %v973, 0
        %v1015 = vsel %vm436, %v975, 0
        %1017 = vmatprep.subr.mxu0 0.0
        %1018 = vmatpush1.msra.mxu0 %v1006
        %1019 = vmatprep.subr.mxu0 0.0
        %1020 = vmatpush1.msra.mxu0 %v1008
        %1021 = vmatprep.subr.mxu0 0.0
        %1022 = vmatpush1.msra.mxu0 0.0
        %1023 = vmatprep.subr.mxu0 0.0
        %1024 = vmatpush1.msra.mxu0 0.0
        %1025 = vmatprep.subr.mxu0 0.0
        %1026 = vmatpush1.msra.mxu0 0.0
        %1027 = vmatprep.subr.mxu0 0.0
        %1028 = vmatpush1.msra.mxu0 0.0
        %1029 = vmatprep.subr.mxu0 0.0
        %1030 = vmatpush1.msra.mxu0 0.0
        %1031 = vmatprep.subr.mxu0 0.0
        %1032 = vmatpush1.msra.mxu0 0.0
        %1033 = vmatprep.subr.mxu0 0.0
        %1034 = vmatpush1.msra.mxu0 0.0
        %1035 = vmatprep.subr.mxu0 0.0
        %1036 = vmatpush1.msra.mxu0 0.0
        %1037 = vmatprep.subr.mxu0 0.0
        %1038 = vmatpush1.msra.mxu0 0.0
        %1039 = vmatprep.subr.mxu0 0.0
        %1040 = vmatpush1.msra.mxu0 0.0
        %1041 = vmatprep.subr.mxu0 0.0
        %1042 = vmatpush1.msra.mxu0 0.0
        %1043 = vmatprep.subr.mxu0 0.0
        %1044 = vmatpush1.msra.mxu0 0.0
        %1045 = vmatprep.subr.mxu0 0.0
        %1046 = vmatpush1.msra.mxu0 0.0
        %1047 = vmatprep.subr.mxu0 0.0
        %1048 = vmatpush1.msra.mxu0 0.0
        %1049 = vmatprep.subr.mxu0 0.0
        %1050 = vmatpush1.msra.mxu0 0.0
        %1051 = vmatprep.subr.mxu0 0.0
        %1052 = vmatpush1.msra.mxu0 0.0
        %1053 = vmatprep.subr.mxu0 0.0
        %1054 = vmatpush1.msra.mxu0 0.0
        %1055 = vmatprep.subr.mxu0 0.0
        %1056 = vmatpush1.msra.mxu0 0.0
        %1057 = vmatprep.subr.mxu0 0.0
        %1058 = vmatpush1.msra.mxu0 0.0
        %1059 = vmatprep.subr.mxu0 0.0
        %1060 = vmatpush1.msra.mxu0 0.0
        %1061 = vmatprep.subr.mxu0 0.0
        %1062 = vmatpush1.msra.mxu0 0.0
        %1063 = vmatprep.subr.mxu0 0.0
        %1064 = vmatpush1.msra.mxu0 0.0
        %1065 = vmatprep.subr.mxu0 0.0
        %1066 = vmatpush1.msra.mxu0 0.0
        %1067 = vmatprep.subr.mxu0 0.0
        %1068 = vmatpush1.msra.mxu0 0.0
        %1069 = vmatprep.subr.mxu0 0.0
        %1070 = vmatpush1.msra.mxu0 0.0
        %1071 = vmatprep.subr.mxu0 0.0
        %1072 = vmatpush1.msra.mxu0 0.0
        %1073 = vmatprep.subr.mxu0 0.0
        %1074 = vmatpush1.msra.mxu0 0.0
        %1075 = vmatprep.subr.mxu0 0.0
        %1076 = vmatpush1.msra.mxu0 0.0
        %1077 = vmatprep.subr.mxu0 0.0
        %1078 = vmatpush1.msra.mxu0 0.0
        %1079 = vmatprep.subr.mxu0 0.0
        %1080 = vmatpush1.msra.mxu0 0.0
        %1081 = vmatprep.mubr.f32.mxu0 0.0
        %1082 = vmatmul.mubr.f32.gmra.mrb[0].mxu0 %v1012
        %v1083 = vpop.f32.mrb[0].mxu0
        %v1084 = vadd.f32 0.0, %v1083
        %v1085 = vpop.f32.mrb[0].mxu0
        %1086 = vmatprep.mubr.f32.mxu0 0.0
        %1087 = vmatmul.mubr.f32.gmra.mrb[0].mxu0 %v1015
        %v1088 = vpop.f32.mrb[0].mxu0
        %v1089 = vadd.f32 0.0, %v1088
        %v1090 = vpop.f32.mrb[0].mxu0
        %1091 = vdwg.mxu0
        %v1092 = vadd.f32 %v1001, %v1084
        %v1093 = vadd.f32 %v1002, %v1089
        %1094 = vst.msk [vmem:[%s998] sm:$0xff] %vm344, %v1092
        %1095 = vst.msk [vmem:[%s998 + $0x8] sm:$0xff] %vm344, %v1093
        %1096 = vst [vmem:[%s940] sm:$0xff] %v952
        %1097 = vst [vmem:[%s940 + $0x8] sm:$0xff] %v953
        %v1098 = vld [vmem:[#allocation5] sm:$0xff]
        %v1099 = vld [vmem:[#allocation5 + $0x8] sm:$0xff]
        %v1100 = vld [vmem:[%s257] sm:$0xff]
        %v1101 = vld [vmem:[%s257 + $0x8] sm:$0xff]
        %v1102 = vld [vmem:[%s266] sm:$0xff]
        %v1103 = vld [vmem:[%s266 + $0x8] sm:$0xff]
        %1106 = vrot.lane.b32.xlu0 %v1098, 32
        %v1107 = vpop.permute.xlu0 %1106
        %1108 = vrot.lane.b32.xlu0 %v1099, 32
        %v1109 = vpop.permute.xlu0 %1108
        %1112 = vrot.lane.b32.xlu0 %v1100, 32
        %v1113 = vpop.permute.xlu0 %1112
        %1114 = vrot.lane.b32.xlu0 %v1101, 32
        %v1115 = vpop.permute.xlu0 %1114
        %v1116 = vsel %vm344, %v1107, 0
        %v1118 = vsel %vm344, %v1109, 0
        %v1120 = vsel %vm344, %v1113, 0
        %v1122 = vsel %vm344, %v1115, 0
        %1124 = vmatprep.subr.mxu0 0.0
        %1125 = vmatpush1.xpose.msra.mxu0 %v1120
        %1126 = vmatprep.subr.mxu0 0.0
        %1127 = vmatpush1.xpose.msra.mxu0 %v1122
        %1128 = vmatprep.subr.mxu0 0.0
        %1129 = vmatpush1.xpose.msra.mxu0 0.0
        %1130 = vmatprep.subr.mxu0 0.0
        %1131 = vmatpush1.xpose.msra.mxu0 0.0
        %1132 = vmatprep.subr.mxu0 0.0
        %1133 = vmatpush1.xpose.msra.mxu0 0.0
        %1134 = vmatprep.subr.mxu0 0.0
        %1135 = vmatpush1.xpose.msra.mxu0 0.0
        %1136 = vmatprep.subr.mxu0 0.0
        %1137 = vmatpush1.xpose.msra.mxu0 0.0
        %1138 = vmatprep.subr.mxu0 0.0
        %1139 = vmatpush1.xpose.msra.mxu0 0.0
        %1140 = vmatprep.subr.mxu0 0.0
        %1141 = vmatpush1.xpose.msra.mxu0 0.0
        %1142 = vmatprep.subr.mxu0 0.0
        %1143 = vmatpush1.xpose.msra.mxu0 0.0
        %1144 = vmatprep.subr.mxu0 0.0
        %1145 = vmatpush1.xpose.msra.mxu0 0.0
        %1146 = vmatprep.subr.mxu0 0.0
        %1147 = vmatpush1.xpose.msra.mxu0 0.0
        %1148 = vmatprep.subr.mxu0 0.0
        %1149 = vmatpush1.xpose.msra.mxu0 0.0
        %1150 = vmatprep.subr.mxu0 0.0
        %1151 = vmatpush1.xpose.msra.mxu0 0.0
        %1152 = vmatprep.subr.mxu0 0.0
        %1153 = vmatpush1.xpose.msra.mxu0 0.0
        %1154 = vmatprep.subr.mxu0 0.0
        %1155 = vmatpush1.xpose.msra.mxu0 0.0
        %1156 = vmatprep.subr.mxu0 0.0
        %1157 = vmatpush1.xpose.msra.mxu0 0.0
        %1158 = vmatprep.subr.mxu0 0.0
        %1159 = vmatpush1.xpose.msra.mxu0 0.0
        %1160 = vmatprep.subr.mxu0 0.0
        %1161 = vmatpush1.xpose.msra.mxu0 0.0
        %1162 = vmatprep.subr.mxu0 0.0
        %1163 = vmatpush1.xpose.msra.mxu0 0.0
        %1164 = vmatprep.subr.mxu0 0.0
        %1165 = vmatpush1.xpose.msra.mxu0 0.0
        %1166 = vmatprep.subr.mxu0 0.0
        %1167 = vmatpush1.xpose.msra.mxu0 0.0
        %1168 = vmatprep.subr.mxu0 0.0
        %1169 = vmatpush1.xpose.msra.mxu0 0.0
        %1170 = vmatprep.subr.mxu0 0.0
        %1171 = vmatpush1.xpose.msra.mxu0 0.0
        %1172 = vmatprep.subr.mxu0 0.0
        %1173 = vmatpush1.xpose.msra.mxu0 0.0
        %1174 = vmatprep.subr.mxu0 0.0
        %1175 = vmatpush1.xpose.msra.mxu0 0.0
        %1176 = vmatprep.subr.mxu0 0.0
        %1177 = vmatpush1.xpose.msra.mxu0 0.0
        %1178 = vmatprep.subr.mxu0 0.0
        %1179 = vmatpush1.xpose.msra.mxu0 0.0
        %1180 = vmatprep.subr.mxu0 0.0
        %1181 = vmatpush1.xpose.msra.mxu0 0.0
        %1182 = vmatprep.subr.mxu0 0.0
        %1183 = vmatpush1.xpose.msra.mxu0 0.0
        %1184 = vmatprep.subr.mxu0 0.0
        %1185 = vmatpush1.xpose.msra.mxu0 0.0
        %1186 = vmatprep.subr.mxu0 0.0
        %1187 = vmatpush1.xpose.msra.mxu0 0.0
        %1188 = vmatprep.mubr.f32.mxu0 0.0
        %1189 = vmatmul.mubr.f32.gmra.mrb[0].mxu0 %v1116
        %v1190 = vpop.f32.mrb[0].mxu0
        %v1191 = vadd.f32 0.0, %v1190
        %v1192 = vpop.f32.mrb[0].mxu0
        %1193 = vmatprep.mubr.f32.mxu0 0.0
        %1194 = vmatmul.mubr.f32.gmra.mrb[0].mxu0 %v1118
        %v1195 = vpop.f32.mrb[0].mxu0
        %v1196 = vadd.f32 0.0, %v1195
        %v1197 = vpop.f32.mrb[0].mxu0
        %1198 = vdwg.mxu0
        %s1199 = scalar_lea.vmem [#allocation2], 48
        %v1200 = vld [vmem:[%s1199] sm:$0xff]
        %v1201 = vld [vmem:[%s1199 + $0x8] sm:$0xff]
        %s1202 = scalar_lea.vmem [#allocation3], 48
        %v1203 = vld [vmem:[%s1202] sm:$0xff]
        %v1204 = vld [vmem:[%s1202 + $0x8] sm:$0xff]
        %v1205 = vsel %vm436, %v1191, -inf
        %1206 = vmax.xlane.f32.xlu0 %v1205
        %v1207 = vpop.xlane.xlu0 %1206
        %v1208 = vsel %vm436, %v1196, -inf
        %1209 = vmax.xlane.f32.xlu0 %v1208
        %v1210 = vpop.xlane.xlu0 %1209
        %v1211 = vmax.f32 %v1200, %v1207
        %v1212 = vmax.f32 %v1201, %v1210
        %v1213 = vsub.f32 %v1200, %v1211
        %v1214 = vsub.f32 %v1201, %v1212
        %v1215 = vmul.f32 %v1213, 1.442695
        %v1216 = vpow.pop %v1215
        %v1217 = vmul.f32 %v1214, 1.442695
        %v1218 = vpow.pop %v1217
        %1220 = vset.pattern.permute.xlu0 0
        %1221 = vperm.xlu0 %1220, %v1211
        %v1222 = vpop.permute.xlu0 %1221
        %1225 = vset.pattern.permute.xlu0 0
        %1226 = vperm.xlu0 %1225, %v1212
        %v1227 = vpop.permute.xlu0 %1226
        %v1229 = vsub.f32 %v1191, %v1222
        %v1230 = vsub.f32 %v1196, %v1227
        %v1231 = vmul.f32 %v1229, 1.442695
        %v1232 = vpow.pop %v1231
        %v1233 = vmul.f32 %v1230, 1.442695
        %v1234 = vpow.pop %v1233
        %v1235 = vsel %vm436, %v1232, 0.0
        %1236 = vadd.xlane.f32.xlu0 %v1235
        %v1237 = vpop.xlane.xlu0 %1236
        %v1238 = vsel %vm436, %v1234, 0.0
        %1239 = vadd.xlane.f32.xlu0 %v1238
        %v1240 = vpop.xlane.xlu0 %1239
        %1242 = vset.pattern.permute.xlu0 0
        %1243 = vperm.xlu0 %1242, %v1216
        %v1244 = vpop.permute.xlu0 %1243
        %1247 = vset.pattern.permute.xlu0 0
        %1248 = vperm.xlu0 %1247, %v1218
        %v1249 = vpop.permute.xlu0 %1248
        %v1251 = vmul.f32 %v1244, %v1203
        %v1252 = vmul.f32 %v1249, %v1204
        %v1253 = vadd.f32 %v1251, %v1237
        %v1254 = vadd.f32 %v1252, %v1240
        %1255 = vst [vmem:[%s1202] sm:$0xff] %v1253
        %1256 = vst [vmem:[%s1202 + $0x8] sm:$0xff] %v1254
        %s1257 = scalar_lea.vmem [#allocation4], 48
        %v1258 = vld [vmem:[%s1257] sm:$0xff]
        %v1259 = vld [vmem:[%s1257 + $0x8] sm:$0xff]
        %v1260 = vmul.f32 %v1244, %v1258
        %v1261 = vmul.f32 %v1249, %v1259
        %1264 = vrot.lane.b32.xlu0 %v1102, 32
        %v1265 = vpop.permute.xlu0 %1264
        %1266 = vrot.lane.b32.xlu0 %v1103, 32
        %v1267 = vpop.permute.xlu0 %1266
        %v1271 = vsel %vm436, %v1232, 0
        %v1274 = vsel %vm436, %v1234, 0
        %1276 = vmatprep.subr.mxu0 0.0
        %1277 = vmatpush1.msra.mxu0 %v1265
        %1278 = vmatprep.subr.mxu0 0.0
        %1279 = vmatpush1.msra.mxu0 %v1267
        %1280 = vmatprep.subr.mxu0 0.0
        %1281 = vmatpush1.msra.mxu0 0.0
        %1282 = vmatprep.subr.mxu0 0.0
        %1283 = vmatpush1.msra.mxu0 0.0
        %1284 = vmatprep.subr.mxu0 0.0
        %1285 = vmatpush1.msra.mxu0 0.0
        %1286 = vmatprep.subr.mxu0 0.0
        %1287 = vmatpush1.msra.mxu0 0.0
        %1288 = vmatprep.subr.mxu0 0.0
        %1289 = vmatpush1.msra.mxu0 0.0
        %1290 = vmatprep.subr.mxu0 0.0
        %1291 = vmatpush1.msra.mxu0 0.0
        %1292 = vmatprep.subr.mxu0 0.0
        %1293 = vmatpush1.msra.mxu0 0.0
        %1294 = vmatprep.subr.mxu0 0.0
        %1295 = vmatpush1.msra.mxu0 0.0
        %1296 = vmatprep.subr.mxu0 0.0
        %1297 = vmatpush1.msra.mxu0 0.0
        %1298 = vmatprep.subr.mxu0 0.0
        %1299 = vmatpush1.msra.mxu0 0.0
        %1300 = vmatprep.subr.mxu0 0.0
        %1301 = vmatpush1.msra.mxu0 0.0
        %1302 = vmatprep.subr.mxu0 0.0
        %1303 = vmatpush1.msra.mxu0 0.0
        %1304 = vmatprep.subr.mxu0 0.0
        %1305 = vmatpush1.msra.mxu0 0.0
        %1306 = vmatprep.subr.mxu0 0.0
        %1307 = vmatpush1.msra.mxu0 0.0
        %1308 = vmatprep.subr.mxu0 0.0
        %1309 = vmatpush1.msra.mxu0 0.0
        %1310 = vmatprep.subr.mxu0 0.0
        %1311 = vmatpush1.msra.mxu0 0.0
        %1312 = vmatprep.subr.mxu0 0.0
        %1313 = vmatpush1.msra.mxu0 0.0
        %1314 = vmatprep.subr.mxu0 0.0
        %1315 = vmatpush1.msra.mxu0 0.0
        %1316 = vmatprep.subr.mxu0 0.0
        %1317 = vmatpush1.msra.mxu0 0.0
        %1318 = vmatprep.subr.mxu0 0.0
        %1319 = vmatpush1.msra.mxu0 0.0
        %1320 = vmatprep.subr.mxu0 0.0
        %1321 = vmatpush1.msra.mxu0 0.0
        %1322 = vmatprep.subr.mxu0 0.0
        %1323 = vmatpush1.msra.mxu0 0.0
        %1324 = vmatprep.subr.mxu0 0.0
        %1325 = vmatpush1.msra.mxu0 0.0
        %1326 = vmatprep.subr.mxu0 0.0
        %1327 = vmatpush1.msra.mxu0 0.0
        %1328 = vmatprep.subr.mxu0 0.0
        %1329 = vmatpush1.msra.mxu0 0.0
        %1330 = vmatprep.subr.mxu0 0.0
        %1331 = vmatpush1.msra.mxu0 0.0
        %1332 = vmatprep.subr.mxu0 0.0
        %1333 = vmatpush1.msra.mxu0 0.0
        %1334 = vmatprep.subr.mxu0 0.0
        %1335 = vmatpush1.msra.mxu0 0.0
        %1336 = vmatprep.subr.mxu0 0.0
        %1337 = vmatpush1.msra.mxu0 0.0
        %1338 = vmatprep.subr.mxu0 0.0
        %1339 = vmatpush1.msra.mxu0 0.0
        %1340 = vmatprep.mubr.f32.mxu0 0.0
        %1341 = vmatmul.mubr.f32.gmra.mrb[0].mxu0 %v1271
        %v1342 = vpop.f32.mrb[0].mxu0
        %v1343 = vadd.f32 0.0, %v1342
        %v1344 = vpop.f32.mrb[0].mxu0
        %1345 = vmatprep.mubr.f32.mxu0 0.0
        %1346 = vmatmul.mubr.f32.gmra.mrb[0].mxu0 %v1274
        %v1347 = vpop.f32.mrb[0].mxu0
        %v1348 = vadd.f32 0.0, %v1347
        %v1349 = vpop.f32.mrb[0].mxu0
        %1350 = vdwg.mxu0
        %v1351 = vadd.f32 %v1260, %v1343
        %v1352 = vadd.f32 %v1261, %v1348
        %1353 = vst.msk [vmem:[%s1257] sm:$0xff] %vm344, %v1351
        %1354 = vst.msk [vmem:[%s1257 + $0x8] sm:$0xff] %vm344, %v1352
        %1355 = vst [vmem:[%s1199] sm:$0xff] %v1211
        %1356 = vst [vmem:[%s1199 + $0x8] sm:$0xff] %v1212
        %p1357 = scmp.eq.s32.totalorder %s30, 1
        // Predicated region
        $region49: #{tpu_custom_call.1} parent=31 // pred_check
          %p1358 = pneg %p1357
        $region50: #{tpu_custom_call.1} parent=31 // pred_check_branch
          %1360 = sbr.rel (%p1358) target = $region52
        $region51: #{tpu_custom_call.1} parent=31 // pred_region
          %v1361 = vld [vmem:[#allocation3] sm:$0xff]
          %v1362 = vld [vmem:[#allocation3 + $0x8] sm:$0xff]
          %v1363 = vrcp.pop %v1361
          %v1364 = vrcp.pop %v1362
          %v1365 = vld [vmem:[#allocation4] sm:$0xff]
          %v1366 = vld [vmem:[#allocation4 + $0x8] sm:$0xff]
          %1368 = vset.pattern.permute.xlu0 0
          %1369 = vperm.xlu0 %1368, %v1363
          %v1370 = vpop.permute.xlu0 %1369
          %1373 = vset.pattern.permute.xlu0 0
          %1374 = vperm.xlu0 %1373, %v1364
          %v1375 = vpop.permute.xlu0 %1374
          %v1377 = vmul.f32 %v1365, %v1370
          %v1378 = vmul.f32 %v1366, %v1375
          %1379 = vst.msk [vmem:[%s298] sm:$0xff] %vm344, %v1377
          %1380 = vst.msk [vmem:[%s298 + $0x8] sm:$0xff] %vm344, %v1378
          %v1381 = vld [vmem:[%s684] sm:$0xff]
          %v1382 = vld [vmem:[%s684 + $0x8] sm:$0xff]
          %v1383 = vrcp.pop %v1381
          %v1384 = vrcp.pop %v1382
          %v1385 = vld [vmem:[%s739] sm:$0xff]
          %v1386 = vld [vmem:[%s739 + $0x8] sm:$0xff]
          %1388 = vset.pattern.permute.xlu0 0
          %1389 = vperm.xlu0 %1388, %v1383
          %v1390 = vpop.permute.xlu0 %1389
          %1393 = vset.pattern.permute.xlu0 0
          %1394 = vperm.xlu0 %1393, %v1384
          %v1395 = vpop.permute.xlu0 %1394
          %v1397 = vmul.f32 %v1385, %v1390
          %v1398 = vmul.f32 %v1386, %v1395
          %1401 = vrot.lane.b32.xlu0 %v1397, 32
          %v1402 = vpop.permute.xlu0 %1401
          %1403 = vrot.lane.b32.xlu0 %v1398, 32
          %v1404 = vpop.permute.xlu0 %1403
          %vm1407 = vcmask 523520
          %1408 = vst.msk [vmem:[%s298] sm:$0xff] %vm1407, %v1402
          %1409 = vst.msk [vmem:[%s298 + $0x8] sm:$0xff] %vm1407, %v1404
          %v1410 = vld [vmem:[%s943] sm:$0xff]
          %v1411 = vld [vmem:[%s943 + $0x8] sm:$0xff]
          %v1412 = vrcp.pop %v1410
          %v1413 = vrcp.pop %v1411
          %v1414 = vld [vmem:[%s998] sm:$0xff]
          %v1415 = vld [vmem:[%s998 + $0x8] sm:$0xff]
          %1417 = vset.pattern.permute.xlu0 0
          %1418 = vperm.xlu0 %1417, %v1412
          %v1419 = vpop.permute.xlu0 %1418
          %1422 = vset.pattern.permute.xlu0 0
          %1423 = vperm.xlu0 %1422, %v1413
          %v1424 = vpop.permute.xlu0 %1423
          %v1426 = vmul.f32 %v1414, %v1419
          %v1427 = vmul.f32 %v1415, %v1424
          %1430 = vrot.lane.b32.xlu0 %v1426, 64
          %v1431 = vpop.permute.xlu0 %1430
          %1432 = vrot.lane.b32.xlu0 %v1427, 64
          %v1433 = vpop.permute.xlu0 %1432
          %vm1436 = vcmask 785920
          %1437 = vst.msk [vmem:[%s298] sm:$0xff] %vm1436, %v1431
          %1438 = vst.msk [vmem:[%s298 + $0x8] sm:$0xff] %vm1436, %v1433
          %v1439 = vld [vmem:[%s1202] sm:$0xff]
          %v1440 = vld [vmem:[%s1202 + $0x8] sm:$0xff]
          %v1441 = vrcp.pop %v1439
          %v1442 = vrcp.pop %v1440
          %v1443 = vld [vmem:[%s1257] sm:$0xff]
          %v1444 = vld [vmem:[%s1257 + $0x8] sm:$0xff]
          %1446 = vset.pattern.permute.xlu0 0
          %1447 = vperm.xlu0 %1446, %v1441
          %v1448 = vpop.permute.xlu0 %1447
          %1451 = vset.pattern.permute.xlu0 0
          %1452 = vperm.xlu0 %1451, %v1442
          %v1453 = vpop.permute.xlu0 %1452
          %v1455 = vmul.f32 %v1443, %v1448
          %v1456 = vmul.f32 %v1444, %v1453
          %1459 = vrot.lane.b32.xlu0 %v1455, 96
          %v1460 = vpop.permute.xlu0 %1459
          %1461 = vrot.lane.b32.xlu0 %v1456, 96
          %v1462 = vpop.permute.xlu0 %1461
          %vm1465 = vcmask 1048320
          %1466 = vst.msk [vmem:[%s298] sm:$0xff] %vm1465, %v1460
          %1467 = vst.msk [vmem:[%s298 + $0x8] sm:$0xff] %vm1465, %v1462
        $region52: #{tpu_custom_call.1} parent=31 // pred_fallthru
          _
        %s1468 = sand.u32 %s136, 1
        %s1469 = scalar_lea.sflag [#allocation8], %s1468
        %s1470 = sand.u32 %s136, 1
        %s1471 = smul.addr %s1470, 16
        %s1472 = scalar_lea.vmem [#allocation12], %s1471
        // Predicated region
        $region53: #{tpu_custom_call.1} parent=31 // pred_check
          %p1473 = pneg %p146
        $region54: #{tpu_custom_call.1} parent=31 // pred_check_branch
          %1475 = sbr.rel (%p1473) target = $region56
        $region55: #{tpu_custom_call.1} parent=31 // pred_region
          %s1476 = smul.u32 2, %s29
          %s1478 = ssub.s32 256, 256
          %1479 = vsyncadd %s1469, %s1478
          %s1480 = smul.addr %s28, 4
          %s1481 = sadd.s32 %s1476, %s1480
          %s1482 = smul.addr %s1481, 128
          %s1483 = scalar_lea.hbm %s3, %s1482
          %s1484 = sshll.u32 %s1472, 4
          %s1485 = int_to_ptr.vmem [resolvable:$true] %s1484
          %1490 = dma.vmem_to_hbm [thread:$0]  %s1485, 256, %s1483, %s1469, 128, 128, 8
        $region56: #{tpu_custom_call.1} parent=31 // pred_fallthru
          _
      $region32: #{tpu_custom_call.1} parent=5 // pred_fallthru
        _
      %p1491 = scmp.le.s32.totalorder 2, %s18
      // Predicated region
      $region57: #{tpu_custom_call.1} parent=5 // pred_check
        %p1492 = pneg %p1491
      $region58: #{tpu_custom_call.1} parent=5 // pred_check_branch
        %1494 = sbr.rel (%p1492) target = $region60
      $region59: #{tpu_custom_call.1} parent=5 // pred_region
        %s1495 = ssub.s32 %s18, 2
        // Predicated region
        $region61: #{tpu_custom_call.1} parent=59 // pred_check
          %p1496 = pneg %p152
        $region62: #{tpu_custom_call.1} parent=59 // pred_check_branch
          %1498 = sbr.rel (%p1496) target = $region64
        $region63: #{tpu_custom_call.1} parent=59 // pred_region
          %s1499 = sand.u32 %s137, 1
          %s1500 = scalar_lea.sflag [#allocation8], %s1499
          %s1501 = sand.u32 %s137, 1
          %s1502 = smul.addr %s1501, 16
          %s1503 = scalar_lea.vmem [#allocation12], %s1502
          %1504 = dma.done %s1500, 256
        $region64: #{tpu_custom_call.1} parent=59 // pred_fallthru
          _
      $region60: #{tpu_custom_call.1} parent=5 // pred_fallthru
        _
    $region6: #{tpu_custom_call.1} parent=1 // loop_footer
      %s22 = sadd.s32 1, %s18
    $region7: #{tpu_custom_call.1} parent=1 // loop_footer_branch
      %17 = sbr.rel target = $region3
    $region8: #{tpu_custom_call.1} parent=1 // loop_exit
      _
    %1505 = vsyncpa [#allocation7], 1
    %s1506 = scalar_lea.sflag [#allocation7], 1
    %1507 = vsyncpa %s1506, 1
    %1508 = vsyncpa [#allocation10], 1
    %s1509 = scalar_lea.sflag [#allocation10], 1
    %1510 = vsyncpa %s1509, 1
    %1511 = vsyncpa [#allocation8], 1
    %s1512 = scalar_lea.sflag [#allocation8], 1
    %1513 = vsyncpa %s1512, 1

</llo_original>
